<compile_context>
chip_gen: v6e
topology: v6e:2x2x1
jax: 0.10.0
libtpu: 0.0.40
codegen_flags: <defaults>
</compile_context>

<pallas_src>
import functools
import math

import jax
import jax.numpy as jnp
from jax.experimental import pallas as pl
from jax.experimental.pallas import tpu as pltpu


def _layernorm(y, g, b, eps=1e-5):
    mu = jnp.mean(y, axis=-1, keepdims=True)
    var = jnp.mean((y - mu) ** 2, axis=-1, keepdims=True)
    return (y - mu) * jax.lax.rsqrt(var + eps) * g + b


def ft_block_kernel(x_ref,
                    wq_ref, bq_ref, wk_ref, bk_ref, wv_ref, bv_ref,
                    wo_ref, bo_ref,
                    g1_ref, be1_ref,
                    w1_ref, b1_ref, w2_ref, b2_ref,
                    se1w_ref, se1b_ref, se2w_ref, se2b_ref,
                    g2_ref, be2_ref,
                    o_ref,
                    *, num_heads, block_batch, seq):
    f32 = jnp.float32
    bf16 = jnp.bfloat16
    H = num_heads
    S = seq
    Bt = block_batch
    rows, E = x_ref.shape                       # rows == Bt * S
    hd = E // H

    x = x_ref[...].astype(f32)                  # residual path stays f32
    x_b = x.astype(bf16)

    # ---- Q/K/V projections (weights pre-split & Q pre-scaled, bf16/f32 acc) --
    q = jnp.dot(x_b, wq_ref[...], preferred_element_type=f32) + bq_ref[...]
    k = jnp.dot(x_b, wk_ref[...], preferred_element_type=f32) + bk_ref[...]
    v = jnp.dot(x_b, wv_ref[...], preferred_element_type=f32) + bv_ref[...]

    q3 = q.reshape(Bt, S, E).astype(bf16)
    k3 = k.reshape(Bt, S, E).astype(bf16)
    v3 = v.reshape(Bt, S, E).astype(bf16)

    # ---- head mask built in-kernel (no HBM input / DMA) ----------------------
    # owns[h, :, e] == 1 iff feature e belongs to head h (range compare, no div)
    h_idx = jax.lax.broadcasted_iota(jnp.int32, (H, S, E), 0)
    e_idx = jax.lax.broadcasted_iota(jnp.int32, (H, S, E), 2)
    owns = jnp.logical_and(e_idx >= h_idx * hd, e_idx < (h_idx + 1) * hd)
    hmask_f = jnp.where(owns, 1.0, 0.0).astype(f32).reshape(H * S, E)
    hmask_b = hmask_f.astype(bf16)

    # ---- all heads in one batched contraction ("block-diagonal" trick) -------
    # q_bd[b, h*S + i, :] keeps only head-h features of query i, so contracting
    # with the FULL K over E gives per-head scores, and a plain row softmax is
    # numerically identical to the per-head softmax.
    q_bd = jnp.broadcast_to(q3[:, None, :, :], (Bt, H, S, E)).reshape(Bt, H * S, E)
    q_bd = q_bd * hmask_b                                             # bf16 mask
    s = jnp.einsum('bie,bje->bij', q_bd, k3,
                   preferred_element_type=f32)                        # (Bt,H*S,S)
    s = s - jnp.max(s, axis=-1, keepdims=True)
    p = jnp.exp(s)                                                    # f32 softmax
    p = p * pl.reciprocal(jnp.sum(p, axis=-1, keepdims=True), approx=True)

    ctx_bd = jnp.einsum('bij,bje->bie', p.astype(bf16), v3,
                        preferred_element_type=f32) * hmask_f         # (Bt,H*S,E)
    ctx = ctx_bd[:, 0:S, :]
    for h in range(1, H):                       # H-1 cheap (Bt,S,E) vector adds
        ctx = ctx + ctx_bd[:, h * S:(h + 1) * S, :]
    ctx = ctx.reshape(rows, E)

    attn_out = jnp.dot(ctx.astype(bf16), wo_ref[...],
                       preferred_element_type=f32) + bo_ref[...]

    # ---- residual + LayerNorm 1 (f32) ----------------------------------------
    x1 = _layernorm(x + attn_out, g1_ref[...], be1_ref[...])

    # ---- FFN: Linear -> ReLU -> [Dropout=id] -> Linear -> [Dropout=id] -------
    h1 = jnp.maximum(
        jnp.dot(x1.astype(bf16), w1_ref[...], preferred_element_type=f32)
        + b1_ref[...], 0.0)
    ffn = jnp.dot(h1.astype(bf16), w2_ref[...],
                  preferred_element_type=f32) + b2_ref[...]

    # ---- Squeeze-Excitation over the sequence dim (kept f32: R is tiny) ------
    ffn3 = ffn.reshape(Bt, S, E)
    z = jnp.mean(ffn3, axis=1)                                        # (Bt, E)
    z1 = jnp.maximum(
        jnp.dot(z, se1w_ref[...], preferred_element_type=f32) + se1b_ref[...], 0.0)
    gate = jax.nn.sigmoid(
        jnp.dot(z1, se2w_ref[...], preferred_element_type=f32) + se2b_ref[...])
    se_out = (ffn3 * gate[:, None, :]).reshape(rows, E)

    # ---- residual + LayerNorm 2 ----------------------------------------------
    x2 = _layernorm(x1 + se_out, g2_ref[...], be2_ref[...])
    # TODO(synk): with E=32 this store uses 32/128 lanes (masked vst); padding E
    # to 128 in the I/O layout would make it lane-dense, but the relayout cost
    # is not worth it at these sizes.
    o_ref[...] = x2.astype(o_ref.dtype)


def prepare_params(params, num_heads):
    """One-time host-side prep (hoisted out of the per-call wrapper):
    split QKV weights, fold 1/sqrt(head_dim) into Q, cast matmul weights to
    bf16.  Call once and reuse the result for every kernel call."""
    bf16 = jnp.bfloat16
    E = params["gamma1"].shape[-1]
    hd = E // num_heads
    scale = 1.0 / math.sqrt(hd)
    w_in = params["w_in_T"]                     # (E, 3E)
    b_in = params["b_in"]                       # (1, 3E)
    return {
        "wq": (w_in[:, :E] * scale).astype(bf16),
        "bq": b_in[:, :E] * scale,
        "wk": w_in[:, E:2 * E].astype(bf16),
        "bk": b_in[:, E:2 * E],
        "wv": w_in[:, 2 * E:].astype(bf16),
        "bv": b_in[:, 2 * E:],
        "wo": params["w_out_T"].astype(bf16),
        "bo": params["b_out"],
        "gamma1": params["gamma1"], "beta1": params["beta1"],
        "w1": params["w1_T"].astype(bf16), "b1": params["b1"],
        "w2": params["w2_T"].astype(bf16), "b2": params["b2"],
        # SE matmuls stay f32 (N-dim is only E/16 wide; MXU/bf16 gains nothing)
        "se1w": params["se1_T"], "se1b": params["se1_b"],
        "se2w": params["se2_T"], "se2b": params["se2_b"],
        "gamma2": params["gamma2"], "beta2": params["beta2"],
    }


def _choose_block_batch(B, S, target_rows=512):
    """Batch items fused per grid step.  Single step unless the batch is big
    enough that every step still presents >= target_rows rows to the MXU
    (per-step overhead ~0.35us; splitting tiny work across steps/TCs costs
    more than it returns)."""
    bt = max(1, min(B, max(1, target_rows // max(S, 1))))
    while B % bt:
        bt -= 1
    # block rows must be a multiple of the 8-row sublane tile (or the full array)
    if (bt * S) % 8 != 0 and bt != B:
        bt = B
    return bt


def ft_transformer_block(x, prepared, num_heads, block_batch=None):
    B, S, E = x.shape
    if E % num_heads:
        raise ValueError("embed_dim must be divisible by num_heads")
    bt = _choose_block_batch(B, S) if block_batch is None else block_batch
    if B % bt:
        raise ValueError(f"batch {B} is not divisible by block_batch {bt}")
    rows = bt * S

    param_list = [
        prepared["wq"], prepared["bq"],
        prepared["wk"], prepared["bk"],
        prepared["wv"], prepared["bv"],
        prepared["wo"], prepared["bo"],
        prepared["gamma1"], prepared["beta1"],
        prepared["w1"], prepared["b1"],
        prepared["w2"], prepared["b2"],
        prepared["se1w"], prepared["se1b"],
        prepared["se2w"], prepared["se2b"],
        prepared["gamma2"], prepared["beta2"],
    ]

    # 2-D (B*S, E) in/out: the (Bt*S, E) flattening is explicit at BlockSpec level.
    x2d = x.reshape(B * S, E)
    in_specs = [pl.BlockSpec((rows, E), lambda i: (i, 0))]
    for p in param_list:
        # Full-array blocks with constant index maps -> weights stay VMEM-resident.
        # TODO(synk): at transformer-sized E/F add pipeline_mode=pl.Buffered(1)
        # here to avoid double-buffered weight copies (matters on v7x 64 MiB VMEM).
        in_specs.append(pl.BlockSpec(p.shape, lambda i, nd=p.ndim: (0,) * nd))

    # Explicit scoped-VMEM limit only when resident weights + activation blocks
    # outgrow the conservative default (v5e default scope is 16 MiB).
    F = prepared["w1"].shape[1]
    weight_bytes = sum(int(p.size) * p.dtype.itemsize for p in param_list)
    temp_bytes = rows * (8 * E + 2 * F + 2 * num_heads * max(S, E)) * 4
    est = 2 * weight_bytes + 4 * rows * E * 4 + temp_bytes
    vmem_limit = min(2 * est, 64 * 1024 * 1024) if est > 12 * 1024 * 1024 else None

    out2d = pl.pallas_call(
        functools.partial(ft_block_kernel, num_heads=num_heads,
                          block_batch=bt, seq=S),
        out_shape=jax.ShapeDtypeStruct((B * S, E), x.dtype),
        grid=(B // bt,),
        in_specs=in_specs,
        out_specs=pl.BlockSpec((rows, E), lambda i: (i, 0)),
        compiler_params=pltpu.CompilerParams(
            dimension_semantics=("parallel",),
            vmem_limit_bytes=vmem_limit),
    )(x2d, *param_list)
    return out2d.reshape(B, S, E)


def reference_forward(x, p, num_heads):
    """Pure-JAX f32 reference mirroring the PyTorch forward (eval mode)."""
    B, S, E = x.shape
    hd = E // num_heads
    qkv = x @ p["w_in_T"] + p["b_in"]
    q, k, v = jnp.split(qkv, 3, axis=-1)
    q = q.reshape(B, S, num_heads, hd).transpose(0, 2, 1, 3)
    k = k.reshape(B, S, num_heads, hd).transpose(0, 2, 1, 3)
    v = v.reshape(B, S, num_heads, hd).transpose(0, 2, 1, 3)
    s = jnp.einsum("bhqd,bhkd->bhqk", q, k) / math.sqrt(hd)
    a = jax.nn.softmax(s, axis=-1)
    ctx = jnp.einsum("bhqk,bhkd->bhqd", a, v).transpose(0, 2, 1, 3).reshape(B, S, E)
    attn_out = ctx @ p["w_out_T"] + p["b_out"]

    def ln(y, g, b):
        mu = y.mean(-1, keepdims=True)
        var = ((y - mu) ** 2).mean(-1, keepdims=True)
        return (y - mu) / jnp.sqrt(var + 1e-5) * g + b

    x1 = ln(x + attn_out, p["gamma1"], p["beta1"])
    h1 = jax.nn.relu(x1 @ p["w1_T"] + p["b1"])
    ffn = h1 @ p["w2_T"] + p["b2"]
    z = ffn.mean(axis=1)                                 # (B, E)
    z1 = jax.nn.relu(z @ p["se1_T"] + p["se1_b"])
    z2 = jax.nn.sigmoid(z1 @ p["se2_T"] + p["se2_b"])
    se_out = ffn * z2[:, None, :]
    return ln(x1 + se_out, p["gamma2"], p["beta2"])


def init_params(key, embed_dim, ff_dim, reduction=16):
    E, F = embed_dim, ff_dim
    R = max(E // reduction, 1)
    ks = jax.random.split(key, 8)
    sc = 0.05
    return {
        # attention in-proj (stored transposed for x @ W)
        "w_in_T": jax.random.normal(ks[0], (E, 3 * E), jnp.float32) * sc,
        "b_in": jax.random.normal(ks[1], (1, 3 * E), jnp.float32) * sc,
        # attention out-proj
        "w_out_T": jax.random.normal(ks[2], (E, E), jnp.float32) * sc,
        "b_out": jax.random.normal(ks[3], (1, E), jnp.float32) * sc,
        # LayerNorm 1
        "gamma1": jnp.ones((1, E), jnp.float32),
        "beta1": jnp.zeros((1, E), jnp.float32),
        # FFN
        "w1_T": jax.random.normal(ks[4], (E, F), jnp.float32) * sc,
        "b1": jax.random.normal(ks[5], (1, F), jnp.float32) * sc,
        "w2_T": jax.random.normal(ks[6], (F, E), jnp.float32) * sc,
        "b2": jax.random.normal(ks[7], (1, E), jnp.float32) * sc,
        # SqueezeExcitation
        "se1_T": jax.random.normal(jax.random.PRNGKey(100), (E, R), jnp.float32) * sc,
        "se1_b": jax.random.normal(jax.random.PRNGKey(101), (1, R), jnp.float32) * sc,
        "se2_T": jax.random.normal(jax.random.PRNGKey(102), (R, E), jnp.float32) * sc,
        "se2_b": jax.random.normal(jax.random.PRNGKey(103), (1, E), jnp.float32) * sc,
        # LayerNorm 2
        "gamma2": jnp.ones((1, E), jnp.float32),
        "beta2": jnp.zeros((1, E), jnp.float32),
    }


if __name__ == "__main__":
    B, S, E = 2, 8, 32          # batch, seq, embed
    NUM_HEADS = 4
    FF_DIM = 64

    key = jax.random.PRNGKey(0)
    kx, kp = jax.random.split(key)
    x = jax.random.normal(kx, (B, S, E), jnp.float32)
    params = init_params(kp, E, FF_DIM)

    # one-time param prep (bf16 cast, QKV split, q-scale fold) — not per call
    prepared = prepare_params(params, NUM_HEADS)

    out = ft_transformer_block(x, prepared, NUM_HEADS)
    out = jax.block_until_ready(out)

    ref = reference_forward(x, params, NUM_HEADS)
    assert out.shape == (B, S, E)
    max_diff = float(jnp.max(jnp.abs(out - ref)))
    # bf16 MXU operands (f32 accumulation) -> looser tolerance than pure f32
    assert jnp.allclose(out, ref, atol=2e-2, rtol=2e-2), (
        f"max abs diff = {max_diff}")

    print("KERNEL_OK")
</pallas_src>

<mosaic_0001>
module attributes {stable_mosaic.version = 11 : i64} {
  func.func @ft_block_kernel(%arg0: i32, %arg1: memref<16x32xf32, #tpu.memory_space<vmem>>, %arg2: memref<32x32xbf16, #tpu.memory_space<vmem>>, %arg3: memref<1x32xf32, #tpu.memory_space<vmem>>, %arg4: memref<32x32xbf16, #tpu.memory_space<vmem>>, %arg5: memref<1x32xf32, #tpu.memory_space<vmem>>, %arg6: memref<32x32xbf16, #tpu.memory_space<vmem>>, %arg7: memref<1x32xf32, #tpu.memory_space<vmem>>, %arg8: memref<32x32xbf16, #tpu.memory_space<vmem>>, %arg9: memref<1x32xf32, #tpu.memory_space<vmem>>, %arg10: memref<1x32xf32, #tpu.memory_space<vmem>>, %arg11: memref<1x32xf32, #tpu.memory_space<vmem>>, %arg12: memref<32x64xbf16, #tpu.memory_space<vmem>>, %arg13: memref<1x64xf32, #tpu.memory_space<vmem>>, %arg14: memref<64x32xbf16, #tpu.memory_space<vmem>>, %arg15: memref<1x32xf32, #tpu.memory_space<vmem>>, %arg16: memref<32x2xf32, #tpu.memory_space<vmem>>, %arg17: memref<1x2xf32, #tpu.memory_space<vmem>>, %arg18: memref<2x32xf32, #tpu.memory_space<vmem>>, %arg19: memref<1x32xf32, #tpu.memory_space<vmem>>, %arg20: memref<1x32xf32, #tpu.memory_space<vmem>>, %arg21: memref<1x32xf32, #tpu.memory_space<vmem>>, %arg22: memref<16x32xf32, #tpu.memory_space<vmem>>) attributes {dimension_semantics = [#tpu.dimension_semantics<parallel>], iteration_bounds = array<i64: 1>, scalar_prefetch = 0 : i64, scratch_operands = 0 : i64, tpu.core_type = #tpu.core_type<tc>, window_params = [{transform_indices = @transform_0, window_bounds = array<i64: 16, 32>}, {pipeline_mode = #tpu.pipeline_mode<synchronous>, transform_indices = @transform_1, window_bounds = array<i64: 32, 32>}, {pipeline_mode = #tpu.pipeline_mode<synchronous>, transform_indices = @transform_2, window_bounds = array<i64: 1, 32>}, {pipeline_mode = #tpu.pipeline_mode<synchronous>, transform_indices = @transform_3, window_bounds = array<i64: 32, 32>}, {pipeline_mode = #tpu.pipeline_mode<synchronous>, transform_indices = @transform_4, window_bounds = array<i64: 1, 32>}, {pipeline_mode = #tpu.pipeline_mode<synchronous>, transform_indices = @transform_5, window_bounds = array<i64: 32, 32>}, {pipeline_mode = #tpu.pipeline_mode<synchronous>, transform_indices = @transform_6, window_bounds = array<i64: 1, 32>}, {pipeline_mode = #tpu.pipeline_mode<synchronous>, transform_indices = @transform_7, window_bounds = array<i64: 32, 32>}, {pipeline_mode = #tpu.pipeline_mode<synchronous>, transform_indices = @transform_8, window_bounds = array<i64: 1, 32>}, {pipeline_mode = #tpu.pipeline_mode<synchronous>, transform_indices = @transform_9, window_bounds = array<i64: 1, 32>}, {pipeline_mode = #tpu.pipeline_mode<synchronous>, transform_indices = @transform_10, window_bounds = array<i64: 1, 32>}, {pipeline_mode = #tpu.pipeline_mode<synchronous>, transform_indices = @transform_11, window_bounds = array<i64: 32, 64>}, {pipeline_mode = #tpu.pipeline_mode<synchronous>, transform_indices = @transform_12, window_bounds = array<i64: 1, 64>}, {pipeline_mode = #tpu.pipeline_mode<synchronous>, transform_indices = @transform_13, window_bounds = array<i64: 64, 32>}, {pipeline_mode = #tpu.pipeline_mode<synchronous>, transform_indices = @transform_14, window_bounds = array<i64: 1, 32>}, {pipeline_mode = #tpu.pipeline_mode<synchronous>, transform_indices = @transform_15, window_bounds = array<i64: 32, 2>}, {pipeline_mode = #tpu.pipeline_mode<synchronous>, transform_indices = @transform_16, window_bounds = array<i64: 1, 2>}, {pipeline_mode = #tpu.pipeline_mode<synchronous>, transform_indices = @transform_17, window_bounds = array<i64: 2, 32>}, {pipeline_mode = #tpu.pipeline_mode<synchronous>, transform_indices = @transform_18, window_bounds = array<i64: 1, 32>}, {pipeline_mode = #tpu.pipeline_mode<synchronous>, transform_indices = @transform_19, window_bounds = array<i64: 1, 32>}, {pipeline_mode = #tpu.pipeline_mode<synchronous>, transform_indices = @transform_20, window_bounds = array<i64: 1, 32>}, {transform_indices = @transform_21, window_bounds = array<i64: 16, 32>}]} {
    %c0 = arith.constant 0 : index
    %c0_0 = arith.constant 0 : index
    %0 = vector.load %arg1[%c0, %c0_0] : memref<16x32xf32, #tpu.memory_space<vmem>>, vector<16x32xf32>
    %1 = arith.truncf %0 : vector<16x32xf32> to vector<16x32xbf16>
    %c0_1 = arith.constant 0 : index
    %c0_2 = arith.constant 0 : index
    %2 = vector.load %arg2[%c0_1, %c0_2] : memref<32x32xbf16, #tpu.memory_space<vmem>>, vector<32x32xbf16>
    %cst = arith.constant dense<0.000000e+00> : vector<16x32xf32>
    %3 = tpu.matmul %1, %2, %cst {dimension_numbers = #tpu.dot_dimension_numbers<[1], [0], [0], [1], [0, 0, 1, 1], [], []>} : vector<16x32xbf16>, vector<32x32xbf16>, vector<16x32xf32> -> vector<16x32xf32>
    %c0_3 = arith.constant 0 : index
    %c0_4 = arith.constant 0 : index
    %4 = vector.load %arg3[%c0_3, %c0_4] : memref<1x32xf32, #tpu.memory_space<vmem>>, vector<1x32xf32>
    %5 = vector.broadcast %4 : vector<1x32xf32> to vector<16x32xf32>
    %6 = arith.addf %3, %5 : vector<16x32xf32>
    %c0_5 = arith.constant 0 : index
    %c0_6 = arith.constant 0 : index
    %7 = vector.load %arg4[%c0_5, %c0_6] : memref<32x32xbf16, #tpu.memory_space<vmem>>, vector<32x32xbf16>
    %cst_7 = arith.constant dense<0.000000e+00> : vector<16x32xf32>
    %8 = tpu.matmul %1, %7, %cst_7 {dimension_numbers = #tpu.dot_dimension_numbers<[1], [0], [0], [1], [0, 0, 1, 1], [], []>} : vector<16x32xbf16>, vector<32x32xbf16>, vector<16x32xf32> -> vector<16x32xf32>
    %c0_8 = arith.constant 0 : index
    %c0_9 = arith.constant 0 : index
    %9 = vector.load %arg5[%c0_8, %c0_9] : memref<1x32xf32, #tpu.memory_space<vmem>>, vector<1x32xf32>
    %10 = vector.broadcast %9 : vector<1x32xf32> to vector<16x32xf32>
    %11 = arith.addf %8, %10 : vector<16x32xf32>
    %c0_10 = arith.constant 0 : index
    %c0_11 = arith.constant 0 : index
    %12 = vector.load %arg6[%c0_10, %c0_11] : memref<32x32xbf16, #tpu.memory_space<vmem>>, vector<32x32xbf16>
    %cst_12 = arith.constant dense<0.000000e+00> : vector<16x32xf32>
    %13 = tpu.matmul %1, %12, %cst_12 {dimension_numbers = #tpu.dot_dimension_numbers<[1], [0], [0], [1], [0, 0, 1, 1], [], []>} : vector<16x32xbf16>, vector<32x32xbf16>, vector<16x32xf32> -> vector<16x32xf32>
    %c0_13 = arith.constant 0 : index
    %c0_14 = arith.constant 0 : index
    %14 = vector.load %arg7[%c0_13, %c0_14] : memref<1x32xf32, #tpu.memory_space<vmem>>, vector<1x32xf32>
    %15 = vector.broadcast %14 : vector<1x32xf32> to vector<16x32xf32>
    %16 = arith.addf %13, %15 : vector<16x32xf32>
    %17 = vector.shape_cast %6 : vector<16x32xf32> to vector<2x8x32xf32>
    %18 = arith.truncf %17 : vector<2x8x32xf32> to vector<2x8x32xbf16>
    %19 = vector.shape_cast %11 : vector<16x32xf32> to vector<2x8x32xf32>
    %20 = arith.truncf %19 : vector<2x8x32xf32> to vector<2x8x32xbf16>
    %21 = vector.shape_cast %16 : vector<16x32xf32> to vector<2x8x32xf32>
    %22 = arith.truncf %21 : vector<2x8x32xf32> to vector<2x8x32xbf16>
    %23 = tpu.iota {dimensions = array<i32: 0>} : vector<4x8x32xi32>
    %24 = tpu.iota {dimensions = array<i32: 2>} : vector<4x8x32xi32>
    %c8_i32 = arith.constant 8 : i32
    %25 = vector.broadcast %c8_i32 : i32 to vector<4x8x32xi32>
    %26 = arith.muli %23, %25 : vector<4x8x32xi32>
    %27 = arith.cmpi sge, %24, %26 : vector<4x8x32xi32>
    %c1_i32 = arith.constant 1 : i32
    %28 = vector.broadcast %c1_i32 : i32 to vector<4x8x32xi32>
    %29 = arith.addi %23, %28 : vector<4x8x32xi32>
    %c8_i32_15 = arith.constant 8 : i32
    %30 = vector.broadcast %c8_i32_15 : i32 to vector<4x8x32xi32>
    %31 = arith.muli %29, %30 : vector<4x8x32xi32>
    %32 = arith.cmpi slt, %24, %31 : vector<4x8x32xi32>
    %33 = arith.andi %27, %32 : vector<4x8x32xi1>
    %cst_16 = arith.constant 1.000000e+00 : f32
    %cst_17 = arith.constant 0.000000e+00 : f32
    %34 = vector.broadcast %cst_16 : f32 to vector<4x8x32xf32>
    %35 = vector.broadcast %cst_17 : f32 to vector<4x8x32xf32>
    %36 = arith.select %33, %34, %35 : vector<4x8x32xi1>, vector<4x8x32xf32>
    %37 = vector.shape_cast %36 : vector<4x8x32xf32> to vector<32x32xf32>
    %38 = arith.truncf %37 : vector<32x32xf32> to vector<32x32xbf16>
    %39 = vector.shape_cast %18 : vector<2x8x32xbf16> to vector<2x1x8x32xbf16>
    %40 = vector.shape_cast %39 : vector<2x1x8x32xbf16> to vector<2x1x8x32xbf16>
    %41 = vector.broadcast %40 : vector<2x1x8x32xbf16> to vector<2x4x8x32xbf16>
    %42 = vector.shape_cast %41 : vector<2x4x8x32xbf16> to vector<2x32x32xbf16>
    %43 = vector.shape_cast %38 : vector<32x32xbf16> to vector<1x32x32xbf16>
    %44 = vector.broadcast %43 : vector<1x32x32xbf16> to vector<2x32x32xbf16>
    %45 = arith.mulf %42, %44 : vector<2x32x32xbf16>
    "tpu.trace_start"() <{level = 10 : i32, message = "bie,bje->bij"}> : () -> ()
    %cst_18 = arith.constant dense<0.000000e+00> : vector<2x32x8xf32>
    %46 = tpu.matmul %45, %20, %cst_18 {dimension_numbers = #tpu.dot_dimension_numbers<[2], [2], [1], [1], [0, 0, 0, 1, 1, 1], [0], [0]>} : vector<2x32x32xbf16>, vector<2x8x32xbf16>, vector<2x32x8xf32> -> vector<2x32x8xf32>
    "tpu.trace_stop"() : () -> ()
    %cst_19 = arith.constant dense<0xFF800000> : vector<2x32xf32>
    %47 = vector.multi_reduction <maximumf>, %46, %cst_19 [2] : vector<2x32x8xf32> to vector<2x32xf32>
    %48 = vector.shape_cast %47 : vector<2x32xf32> to vector<2x32x1xf32>
    %49 = vector.broadcast %48 : vector<2x32x1xf32> to vector<2x32x8xf32>
    %50 = arith.subf %46, %49 : vector<2x32x8xf32>
    %51 = math.exp %50 : vector<2x32x8xf32>
    %cst_20 = arith.constant dense<0.000000e+00> : vector<2x32xf32>
    %52 = vector.multi_reduction <add>, %51, %cst_20 [2] : vector<2x32x8xf32> to vector<2x32xf32>
    %53 = vector.shape_cast %52 : vector<2x32xf32> to vector<2x32x1xf32>
    %54 = tpu.reciprocal %53 {approx = true} : vector<2x32x1xf32> -> vector<2x32x1xf32>
    %55 = vector.broadcast %54 : vector<2x32x1xf32> to vector<2x32x8xf32>
    %56 = arith.mulf %51, %55 : vector<2x32x8xf32>
    %57 = arith.truncf %56 : vector<2x32x8xf32> to vector<2x32x8xbf16>
    "tpu.trace_start"() <{level = 10 : i32, message = "bij,bje->bie"}> : () -> ()
    %cst_21 = arith.constant dense<0.000000e+00> : vector<2x32x32xf32>
    %58 = tpu.matmul %57, %22, %cst_21 {dimension_numbers = #tpu.dot_dimension_numbers<[2], [1], [1], [2], [0, 0, 0, 1, 1, 2], [0], [0]>} : vector<2x32x8xbf16>, vector<2x8x32xbf16>, vector<2x32x32xf32> -> vector<2x32x32xf32>
    "tpu.trace_stop"() : () -> ()
    %59 = vector.shape_cast %37 : vector<32x32xf32> to vector<1x32x32xf32>
    %60 = vector.broadcast %59 : vector<1x32x32xf32> to vector<2x32x32xf32>
    %61 = arith.mulf %58, %60 : vector<2x32x32xf32>
    %62 = vector.extract_strided_slice %61 {offsets = [0, 0, 0], sizes = [2, 8, 32], strides = [1, 1, 1]} : vector<2x32x32xf32> to vector<2x8x32xf32>
    %63 = vector.extract_strided_slice %61 {offsets = [0, 8, 0], sizes = [2, 8, 32], strides = [1, 1, 1]} : vector<2x32x32xf32> to vector<2x8x32xf32>
    %64 = arith.addf %62, %63 : vector<2x8x32xf32>
    %65 = vector.extract_strided_slice %61 {offsets = [0, 16, 0], sizes = [2, 8, 32], strides = [1, 1, 1]} : vector<2x32x32xf32> to vector<2x8x32xf32>
    %66 = arith.addf %64, %65 : vector<2x8x32xf32>
    %67 = vector.extract_strided_slice %61 {offsets = [0, 24, 0], sizes = [2, 8, 32], strides = [1, 1, 1]} : vector<2x32x32xf32> to vector<2x8x32xf32>
    %68 = arith.addf %66, %67 : vector<2x8x32xf32>
    %69 = vector.shape_cast %68 : vector<2x8x32xf32> to vector<16x32xf32>
    %70 = arith.truncf %69 : vector<16x32xf32> to vector<16x32xbf16>
    %c0_22 = arith.constant 0 : index
    %c0_23 = arith.constant 0 : index
    %71 = vector.load %arg8[%c0_22, %c0_23] : memref<32x32xbf16, #tpu.memory_space<vmem>>, vector<32x32xbf16>
    %cst_24 = arith.constant dense<0.000000e+00> : vector<16x32xf32>
    %72 = tpu.matmul %70, %71, %cst_24 {dimension_numbers = #tpu.dot_dimension_numbers<[1], [0], [0], [1], [0, 0, 1, 1], [], []>} : vector<16x32xbf16>, vector<32x32xbf16>, vector<16x32xf32> -> vector<16x32xf32>
    %c0_25 = arith.constant 0 : index
    %c0_26 = arith.constant 0 : index
    %73 = vector.load %arg9[%c0_25, %c0_26] : memref<1x32xf32, #tpu.memory_space<vmem>>, vector<1x32xf32>
    %74 = vector.broadcast %73 : vector<1x32xf32> to vector<16x32xf32>
    %75 = arith.addf %72, %74 : vector<16x32xf32>
    %76 = arith.addf %0, %75 : vector<16x32xf32>
    %c0_27 = arith.constant 0 : index
    %c0_28 = arith.constant 0 : index
    %77 = vector.load %arg10[%c0_27, %c0_28] : memref<1x32xf32, #tpu.memory_space<vmem>>, vector<1x32xf32>
    %c0_29 = arith.constant 0 : index
    %c0_30 = arith.constant 0 : index
    %78 = vector.load %arg11[%c0_29, %c0_30] : memref<1x32xf32, #tpu.memory_space<vmem>>, vector<1x32xf32>
    %cst_31 = arith.constant dense<0.000000e+00> : vector<16xf32>
    %79 = vector.multi_reduction <add>, %76, %cst_31 [1] : vector<16x32xf32> to vector<16xf32>
    %80 = vector.shape_cast %79 : vector<16xf32> to vector<16x1xf32>
    %cst_32 = arith.constant 3.200000e+01 : f32
    %81 = vector.broadcast %cst_32 : f32 to vector<16x1xf32>
    %82 = arith.divf %80, %81 : vector<16x1xf32>
    %83 = vector.broadcast %82 : vector<16x1xf32> to vector<16x32xf32>
    %84 = arith.subf %76, %83 : vector<16x32xf32>
    %85 = arith.mulf %84, %84 : vector<16x32xf32>
    %cst_33 = arith.constant dense<0.000000e+00> : vector<16xf32>
    %86 = vector.multi_reduction <add>, %85, %cst_33 [1] : vector<16x32xf32> to vector<16xf32>
    %87 = vector.shape_cast %86 : vector<16xf32> to vector<16x1xf32>
    %cst_34 = arith.constant 3.200000e+01 : f32
    %88 = vector.broadcast %cst_34 : f32 to vector<16x1xf32>
    %89 = arith.divf %87, %88 : vector<16x1xf32>
    %90 = vector.broadcast %82 : vector<16x1xf32> to vector<16x32xf32>
    %91 = arith.subf %76, %90 : vector<16x32xf32>
    %cst_35 = arith.constant 9.99999974E-6 : f32
    %92 = vector.broadcast %cst_35 : f32 to vector<16x1xf32>
    %93 = arith.addf %89, %92 : vector<16x1xf32>
    %94 = math.rsqrt %93 : vector<16x1xf32>
    %95 = vector.broadcast %94 : vector<16x1xf32> to vector<16x32xf32>
    %96 = arith.mulf %91, %95 : vector<16x32xf32>
    %97 = vector.broadcast %77 : vector<1x32xf32> to vector<16x32xf32>
    %98 = arith.mulf %96, %97 : vector<16x32xf32>
    %99 = vector.broadcast %78 : vector<1x32xf32> to vector<16x32xf32>
    %100 = arith.addf %98, %99 : vector<16x32xf32>
    %101 = arith.truncf %100 : vector<16x32xf32> to vector<16x32xbf16>
    %c0_36 = arith.constant 0 : index
    %c0_37 = arith.constant 0 : index
    %102 = vector.load %arg12[%c0_36, %c0_37] : memref<32x64xbf16, #tpu.memory_space<vmem>>, vector<32x64xbf16>
    %cst_38 = arith.constant dense<0.000000e+00> : vector<16x64xf32>
    %103 = tpu.matmul %101, %102, %cst_38 {dimension_numbers = #tpu.dot_dimension_numbers<[1], [0], [0], [1], [0, 0, 1, 1], [], []>} : vector<16x32xbf16>, vector<32x64xbf16>, vector<16x64xf32> -> vector<16x64xf32>
    %c0_39 = arith.constant 0 : index
    %c0_40 = arith.constant 0 : index
    %104 = vector.load %arg13[%c0_39, %c0_40] : memref<1x64xf32, #tpu.memory_space<vmem>>, vector<1x64xf32>
    %105 = vector.broadcast %104 : vector<1x64xf32> to vector<16x64xf32>
    %106 = arith.addf %103, %105 : vector<16x64xf32>
    %cst_41 = arith.constant 0.000000e+00 : f32
    %107 = vector.broadcast %cst_41 : f32 to vector<16x64xf32>
    %108 = arith.maximumf %106, %107 : vector<16x64xf32>
    %109 = arith.truncf %108 : vector<16x64xf32> to vector<16x64xbf16>
    %c0_42 = arith.constant 0 : index
    %c0_43 = arith.constant 0 : index
    %110 = vector.load %arg14[%c0_42, %c0_43] : memref<64x32xbf16, #tpu.memory_space<vmem>>, vector<64x32xbf16>
    %cst_44 = arith.constant dense<0.000000e+00> : vector<16x32xf32>
    %111 = tpu.matmul %109, %110, %cst_44 {dimension_numbers = #tpu.dot_dimension_numbers<[1], [0], [0], [1], [0, 0, 1, 1], [], []>} : vector<16x64xbf16>, vector<64x32xbf16>, vector<16x32xf32> -> vector<16x32xf32>
    %c0_45 = arith.constant 0 : index
    %c0_46 = arith.constant 0 : index
    %112 = vector.load %arg15[%c0_45, %c0_46] : memref<1x32xf32, #tpu.memory_space<vmem>>, vector<1x32xf32>
    %113 = vector.broadcast %112 : vector<1x32xf32> to vector<16x32xf32>
    %114 = arith.addf %111, %113 : vector<16x32xf32>
    %115 = vector.shape_cast %114 : vector<16x32xf32> to vector<2x8x32xf32>
    %cst_47 = arith.constant dense<0.000000e+00> : vector<2x32xf32>
    %116 = vector.multi_reduction <add>, %115, %cst_47 [1] : vector<2x8x32xf32> to vector<2x32xf32>
    %cst_48 = arith.constant 8.000000e+00 : f32
    %117 = vector.broadcast %cst_48 : f32 to vector<2x32xf32>
    %118 = arith.divf %116, %117 : vector<2x32xf32>
    %c0_49 = arith.constant 0 : index
    %c0_50 = arith.constant 0 : index
    %119 = vector.load %arg16[%c0_49, %c0_50] : memref<32x2xf32, #tpu.memory_space<vmem>>, vector<32x2xf32>
    %cst_51 = arith.constant dense<0.000000e+00> : vector<2x2xf32>
    %120 = tpu.matmul %118, %119, %cst_51 {dimension_numbers = #tpu.dot_dimension_numbers<[1], [0], [0], [1], [0, 0, 1, 1], [], []>} : vector<2x32xf32>, vector<32x2xf32>, vector<2x2xf32> -> vector<2x2xf32>
    %c0_52 = arith.constant 0 : index
    %c0_53 = arith.constant 0 : index
    %121 = vector.load %arg17[%c0_52, %c0_53] : memref<1x2xf32, #tpu.memory_space<vmem>>, vector<1x2xf32>
    %122 = vector.broadcast %121 : vector<1x2xf32> to vector<2x2xf32>
    %123 = arith.addf %120, %122 : vector<2x2xf32>
    %cst_54 = arith.constant 0.000000e+00 : f32
    %124 = vector.broadcast %cst_54 : f32 to vector<2x2xf32>
    %125 = arith.maximumf %123, %124 : vector<2x2xf32>
    %c0_55 = arith.constant 0 : index
    %c0_56 = arith.constant 0 : index
    %126 = vector.load %arg18[%c0_55, %c0_56] : memref<2x32xf32, #tpu.memory_space<vmem>>, vector<2x32xf32>
    %cst_57 = arith.constant dense<0.000000e+00> : vector<2x32xf32>
    %127 = tpu.matmul %125, %126, %cst_57 {dimension_numbers = #tpu.dot_dimension_numbers<[1], [0], [0], [1], [0, 0, 1, 1], [], []>} : vector<2x2xf32>, vector<2x32xf32>, vector<2x32xf32> -> vector<2x32xf32>
    %c0_58 = arith.constant 0 : index
    %c0_59 = arith.constant 0 : index
    %128 = vector.load %arg19[%c0_58, %c0_59] : memref<1x32xf32, #tpu.memory_space<vmem>>, vector<1x32xf32>
    %129 = vector.broadcast %128 : vector<1x32xf32> to vector<2x32xf32>
    %130 = arith.addf %127, %129 : vector<2x32xf32>
    %131 = arith.negf %130 : vector<2x32xf32>
    %132 = math.exp %131 : vector<2x32xf32>
    %cst_60 = arith.constant 1.000000e+00 : f32
    %133 = vector.broadcast %cst_60 : f32 to vector<2x32xf32>
    %134 = arith.addf %133, %132 : vector<2x32xf32>
    %135 = arith.divf %133, %134 : vector<2x32xf32>
    %136 = vector.shape_cast %135 : vector<2x32xf32> to vector<2x1x32xf32>
    %137 = vector.broadcast %136 : vector<2x1x32xf32> to vector<2x8x32xf32>
    %138 = arith.mulf %115, %137 : vector<2x8x32xf32>
    %139 = vector.shape_cast %138 : vector<2x8x32xf32> to vector<16x32xf32>
    %140 = arith.addf %100, %139 : vector<16x32xf32>
    %c0_61 = arith.constant 0 : index
    %c0_62 = arith.constant 0 : index
    %141 = vector.load %arg20[%c0_61, %c0_62] : memref<1x32xf32, #tpu.memory_space<vmem>>, vector<1x32xf32>
    %c0_63 = arith.constant 0 : index
    %c0_64 = arith.constant 0 : index
    %142 = vector.load %arg21[%c0_63, %c0_64] : memref<1x32xf32, #tpu.memory_space<vmem>>, vector<1x32xf32>
    %cst_65 = arith.constant dense<0.000000e+00> : vector<16xf32>
    %143 = vector.multi_reduction <add>, %140, %cst_65 [1] : vector<16x32xf32> to vector<16xf32>
    %144 = vector.shape_cast %143 : vector<16xf32> to vector<16x1xf32>
    %cst_66 = arith.constant 3.200000e+01 : f32
    %145 = vector.broadcast %cst_66 : f32 to vector<16x1xf32>
    %146 = arith.divf %144, %145 : vector<16x1xf32>
    %147 = vector.broadcast %146 : vector<16x1xf32> to vector<16x32xf32>
    %148 = arith.subf %140, %147 : vector<16x32xf32>
    %149 = arith.mulf %148, %148 : vector<16x32xf32>
    %cst_67 = arith.constant dense<0.000000e+00> : vector<16xf32>
    %150 = vector.multi_reduction <add>, %149, %cst_67 [1] : vector<16x32xf32> to vector<16xf32>
    %151 = vector.shape_cast %150 : vector<16xf32> to vector<16x1xf32>
    %cst_68 = arith.constant 3.200000e+01 : f32
    %152 = vector.broadcast %cst_68 : f32 to vector<16x1xf32>
    %153 = arith.divf %151, %152 : vector<16x1xf32>
    %154 = vector.broadcast %146 : vector<16x1xf32> to vector<16x32xf32>
    %155 = arith.subf %140, %154 : vector<16x32xf32>
    %cst_69 = arith.constant 9.99999974E-6 : f32
    %156 = vector.broadcast %cst_69 : f32 to vector<16x1xf32>
    %157 = arith.addf %153, %156 : vector<16x1xf32>
    %158 = math.rsqrt %157 : vector<16x1xf32>
    %159 = vector.broadcast %158 : vector<16x1xf32> to vector<16x32xf32>
    %160 = arith.mulf %155, %159 : vector<16x32xf32>
    %161 = vector.broadcast %141 : vector<1x32xf32> to vector<16x32xf32>
    %162 = arith.mulf %160, %161 : vector<16x32xf32>
    %163 = vector.broadcast %142 : vector<1x32xf32> to vector<16x32xf32>
    %164 = arith.addf %162, %163 : vector<16x32xf32>
    %c0_70 = arith.constant 0 : index
    %c0_71 = arith.constant 0 : index
    %165 = vector.load %arg22[%c0_70, %c0_71] : memref<16x32xf32, #tpu.memory_space<vmem>>, vector<16x32xf32>
    tpu.vector_store %arg22[%c0_70, %c0_71], %164 {strides = array<i32>} : memref<16x32xf32, #tpu.memory_space<vmem>>, vector<16x32xf32>,
    return
  }
  func.func @transform_0(%arg0: i32) -> (i32, i32) {
    %c0_i32 = arith.constant 0 : i32
    %c0_i32_0 = arith.constant 0 : i32
    return %arg0, %c0_i32 : i32, i32
  }
  func.func @transform_1(%arg0: i32) -> (i32, i32) {
    %c0_i32 = arith.constant 0 : i32
    %c0_i32_0 = arith.constant 0 : i32
    %c0_i32_1 = arith.constant 0 : i32
    return %c0_i32, %c0_i32_0 : i32, i32
  }
  func.func @transform_2(%arg0: i32) -> (i32, i32) {
    %c0_i32 = arith.constant 0 : i32
    %c0_i32_0 = arith.constant 0 : i32
    %c0_i32_1 = arith.constant 0 : i32
    return %c0_i32, %c0_i32_0 : i32, i32
  }
  func.func @transform_3(%arg0: i32) -> (i32, i32) {
    %c0_i32 = arith.constant 0 : i32
    %c0_i32_0 = arith.constant 0 : i32
    %c0_i32_1 = arith.constant 0 : i32
    return %c0_i32, %c0_i32_0 : i32, i32
  }
  func.func @transform_4(%arg0: i32) -> (i32, i32) {
    %c0_i32 = arith.constant 0 : i32
    %c0_i32_0 = arith.constant 0 : i32
    %c0_i32_1 = arith.constant 0 : i32
    return %c0_i32, %c0_i32_0 : i32, i32
  }
  func.func @transform_5(%arg0: i32) -> (i32, i32) {
    %c0_i32 = arith.constant 0 : i32
    %c0_i32_0 = arith.constant 0 : i32
    %c0_i32_1 = arith.constant 0 : i32
    return %c0_i32, %c0_i32_0 : i32, i32
  }
  func.func @transform_6(%arg0: i32) -> (i32, i32) {
    %c0_i32 = arith.constant 0 : i32
    %c0_i32_0 = arith.constant 0 : i32
    %c0_i32_1 = arith.constant 0 : i32
    return %c0_i32, %c0_i32_0 : i32, i32
  }
  func.func @transform_7(%arg0: i32) -> (i32, i32) {
    %c0_i32 = arith.constant 0 : i32
    %c0_i32_0 = arith.constant 0 : i32
    %c0_i32_1 = arith.constant 0 : i32
    return %c0_i32, %c0_i32_0 : i32, i32
  }
  func.func @transform_8(%arg0: i32) -> (i32, i32) {
    %c0_i32 = arith.constant 0 : i32
    %c0_i32_0 = arith.constant 0 : i32
    %c0_i32_1 = arith.constant 0 : i32
    return %c0_i32, %c0_i32_0 : i32, i32
  }
  func.func @transform_9(%arg0: i32) -> (i32, i32) {
    %c0_i32 = arith.constant 0 : i32
    %c0_i32_0 = arith.constant 0 : i32
    %c0_i32_1 = arith.constant 0 : i32
    return %c0_i32, %c0_i32_0 : i32, i32
  }
  func.func @transform_10(%arg0: i32) -> (i32, i32) {
    %c0_i32 = arith.constant 0 : i32
    %c0_i32_0 = arith.constant 0 : i32
    %c0_i32_1 = arith.constant 0 : i32
    return %c0_i32, %c0_i32_0 : i32, i32
  }
  func.func @transform_11(%arg0: i32) -> (i32, i32) {
    %c0_i32 = arith.constant 0 : i32
    %c0_i32_0 = arith.constant 0 : i32
    %c0_i32_1 = arith.constant 0 : i32
    return %c0_i32, %c0_i32_0 : i32, i32
  }
  func.func @transform_12(%arg0: i32) -> (i32, i32) {
    %c0_i32 = arith.constant 0 : i32
    %c0_i32_0 = arith.constant 0 : i32
    %c0_i32_1 = arith.constant 0 : i32
    return %c0_i32, %c0_i32_0 : i32, i32
  }
  func.func @transform_13(%arg0: i32) -> (i32, i32) {
    %c0_i32 = arith.constant 0 : i32
    %c0_i32_0 = arith.constant 0 : i32
    %c0_i32_1 = arith.constant 0 : i32
    return %c0_i32, %c0_i32_0 : i32, i32
  }
  func.func @transform_14(%arg0: i32) -> (i32, i32) {
    %c0_i32 = arith.constant 0 : i32
    %c0_i32_0 = arith.constant 0 : i32
    %c0_i32_1 = arith.constant 0 : i32
    return %c0_i32, %c0_i32_0 : i32, i32
  }
  func.func @transform_15(%arg0: i32) -> (i32, i32) {
    %c0_i32 = arith.constant 0 : i32
    %c0_i32_0 = arith.constant 0 : i32
    %c0_i32_1 = arith.constant 0 : i32
    return %c0_i32, %c0_i32_0 : i32, i32
  }
  func.func @transform_16(%arg0: i32) -> (i32, i32) {
    %c0_i32 = arith.constant 0 : i32
    %c0_i32_0 = arith.constant 0 : i32
    %c0_i32_1 = arith.constant 0 : i32
    return %c0_i32, %c0_i32_0 : i32, i32
  }
  func.func @transform_17(%arg0: i32) -> (i32, i32) {
    %c0_i32 = arith.constant 0 : i32
    %c0_i32_0 = arith.constant 0 : i32
    %c0_i32_1 = arith.constant 0 : i32
    return %c0_i32, %c0_i32_0 : i32, i32
  }
  func.func @transform_18(%arg0: i32) -> (i32, i32) {
    %c0_i32 = arith.constant 0 : i32
    %c0_i32_0 = arith.constant 0 : i32
    %c0_i32_1 = arith.constant 0 : i32
    return %c0_i32, %c0_i32_0 : i32, i32
  }
  func.func @transform_19(%arg0: i32) -> (i32, i32) {
    %c0_i32 = arith.constant 0 : i32
    %c0_i32_0 = arith.constant 0 : i32
    %c0_i32_1 = arith.constant 0 : i32
    return %c0_i32, %c0_i32_0 : i32, i32
  }
  func.func @transform_20(%arg0: i32) -> (i32, i32) {
    %c0_i32 = arith.constant 0 : i32
    %c0_i32_0 = arith.constant 0 : i32
    %c0_i32_1 = arith.constant 0 : i32
    return %c0_i32, %c0_i32_0 : i32, i32
  }
  func.func @transform_21(%arg0: i32) -> (i32, i32) {
    %c0_i32 = arith.constant 0 : i32
    %c0_i32_0 = arith.constant 0 : i32
    return %arg0, %c0_i32 : i32, i32
  }
}

</mosaic_0001>

<llo_original>
// kernel: tpu_custom_call.1
$region0: #{tpu_custom_call.1}
  #allocation0 [shape = 'u32[]', space=smem, size = 0x4, offset = 0x4, fixed_abs, tag = 'smem constant byte address 0x4 - core index']
  #allocation1 [shape = 'u32[144,128]{1,0:T(1,128)}', space=vmem, size = 0x12000, scoped, tag = 'internal scratch']
  %s0 = inlined_call_operand.vmem [shape: f32[16,32], index: 0, kind: input, shape index: {}]
  %s1 = inlined_call_operand.vmem [shape: bf16[32,32], index: 1, kind: input, shape index: {}]
  %s2 = inlined_call_operand.hbm [shape: f32[1,32], index: 2, kind: input, shape index: {}]
  %s3 = inlined_call_operand.vmem [shape: bf16[32,32], index: 3, kind: input, shape index: {}]
  %s4 = inlined_call_operand.hbm [shape: f32[1,32], index: 4, kind: input, shape index: {}]
  %s5 = inlined_call_operand.vmem [shape: bf16[32,32], index: 5, kind: input, shape index: {}]
  %s6 = inlined_call_operand.hbm [shape: f32[1,32], index: 6, kind: input, shape index: {}]
  %s7 = inlined_call_operand.vmem [shape: bf16[32,32], index: 7, kind: input, shape index: {}]
  %s8 = inlined_call_operand.hbm [shape: f32[1,32], index: 8, kind: input, shape index: {}]
  %s9 = inlined_call_operand.hbm [shape: f32[1,32], index: 9, kind: input, shape index: {}]
  %s10 = inlined_call_operand.hbm [shape: f32[1,32], index: 10, kind: input, shape index: {}]
  %s11 = inlined_call_operand.vmem [shape: bf16[32,64], index: 11, kind: input, shape index: {}]
  %s12 = inlined_call_operand.vmem [shape: f32[1,64], index: 12, kind: input, shape index: {}]
  %s13 = inlined_call_operand.vmem [shape: bf16[64,32], index: 13, kind: input, shape index: {}]
  %s14 = inlined_call_operand.vmem [shape: f32[1,32], index: 14, kind: input, shape index: {}]
  %s15 = inlined_call_operand.vmem [shape: f32[32,2], index: 15, kind: input, shape index: {}]
  %s16 = inlined_call_operand.vmem [shape: f32[1,2], index: 16, kind: input, shape index: {}]
  %s17 = inlined_call_operand.vmem [shape: f32[2,32], index: 17, kind: input, shape index: {}]
  %s18 = inlined_call_operand.vmem [shape: f32[1,32], index: 18, kind: input, shape index: {}]
  %s19 = inlined_call_operand.vmem [shape: f32[1,32], index: 19, kind: input, shape index: {}]
  %s20 = inlined_call_operand.vmem [shape: f32[1,32], index: 20, kind: input, shape index: {}]
  %s21 = inlined_call_operand.hbm [shape: f32[16,32], index: 21, kind: output, shape index: {}]
  %s22 = sld [smem:[#allocation0]]
  $region118: #{tpu_custom_call.1} parent=0
    _
  %s24 = ssub.s32 1, %s22
  %s25 = scalar_select 0, %s24, %s22
  $region1: #{tpu_custom_call.1} parent=0
    #allocation2 [shape = 'u8[512]{0}', space=vmem, size = 0x400, scoped, tag = 'input window, operand 2, single buffered']
    #allocation3 [shape = 's32[1]{0}', space=sflag, size = 0x4, scoped, tag = 'scoped memory for tpu_custom_call.1']
    #allocation4 [shape = 's32[1]{0}', space=sflag, size = 0x4, scoped, tag = 'scoped memory for tpu_custom_call.1']
    #allocation5 [shape = 'u8[512]{0}', space=vmem, size = 0x400, scoped, tag = 'input window, operand 4, single buffered']
    #allocation6 [shape = 's32[1]{0}', space=sflag, size = 0x4, scoped, tag = 'scoped memory for tpu_custom_call.1']
    #allocation7 [shape = 'u8[512]{0}', space=vmem, size = 0x400, scoped, tag = 'input window, operand 6, single buffered']
    #allocation8 [shape = 'u8[512]{0}', space=vmem, size = 0x400, scoped, tag = 'input window, operand 8, single buffered']
    #allocation9 [shape = 's32[1]{0}', space=sflag, size = 0x4, scoped, tag = 'scoped memory for tpu_custom_call.1']
    #allocation10 [shape = 'u8[512]{0}', space=vmem, size = 0x400, scoped, tag = 'input window, operand 9, single buffered']
    #allocation11 [shape = 'u8[512]{0}', space=vmem, size = 0x400, scoped, tag = 'input window, operand 10, single buffered']
    #allocation12 [shape = 's32[1]{0}', space=sflag, size = 0x4, scoped, tag = 'scoped memory for tpu_custom_call.1']
    #allocation13 [shape = 'u8[8192]{0}', space=vmem, size = 0x2000, scoped, tag = 'output window, operand 0, single buffered']
    %26 = vsyncpa [#allocation3], 0
    %27 = vsyncpa [#allocation6], 0
    %28 = vsyncpa [#allocation9], 0
    %29 = vsyncpa [#allocation12], 0
    %30 = vsyncpa [#allocation4], 0
    // Predicated region
    $region2: #{tpu_custom_call.1} parent=1 // pred_check
      _
    $region3: #{tpu_custom_call.1} parent=1 // pred_check_branch
      %32 = sbr.rel (0) target = $region5
    $region4: #{tpu_custom_call.1} parent=1 // pred_region
      _
    $region5: #{tpu_custom_call.1} parent=1 // pred_fallthru
      _
    // Predicated region
    $region6: #{tpu_custom_call.1} parent=1 // pred_check
      _
    $region7: #{tpu_custom_call.1} parent=1 // pred_check_branch
      %34 = sbr.rel (0) target = $region9
    $region8: #{tpu_custom_call.1} parent=1 // pred_region
      _
    $region9: #{tpu_custom_call.1} parent=1 // pred_fallthru
      _
    // Predicated region
    $region10: #{tpu_custom_call.1} parent=1 // pred_check
      _
    $region11: #{tpu_custom_call.1} parent=1 // pred_check_branch
      %36 = sbr.rel (0) target = $region13
    $region12: #{tpu_custom_call.1} parent=1 // pred_region
      %s38 = ssub.s32 16, 16
      %39 = vsyncadd [#allocation3], %s38
      %s41 = sshll.u32 [#allocation2], 4
      %s42 = int_to_ptr.vmem [resolvable:$true] %s41
      %44 = dma.hbm_to_vmem [thread:$0]  %s2, 16, %s42, [#allocation3]
    $region13: #{tpu_custom_call.1} parent=1 // pred_fallthru
      _
    // Predicated region
    $region14: #{tpu_custom_call.1} parent=1 // pred_check
      _
    $region15: #{tpu_custom_call.1} parent=1 // pred_check_branch
      %46 = sbr.rel (0) target = $region17
    $region16: #{tpu_custom_call.1} parent=1 // pred_region
      _
    $region17: #{tpu_custom_call.1} parent=1 // pred_fallthru
      _
    // Predicated region
    $region18: #{tpu_custom_call.1} parent=1 // pred_check
      _
    $region19: #{tpu_custom_call.1} parent=1 // pred_check_branch
      %48 = sbr.rel (0) target = $region21
    $region20: #{tpu_custom_call.1} parent=1 // pred_region
      %s50 = ssub.s32 16, 16
      %51 = vsyncadd [#allocation6], %s50
      %s53 = sshll.u32 [#allocation5], 4
      %s54 = int_to_ptr.vmem [resolvable:$true] %s53
      %56 = dma.hbm_to_vmem [thread:$0]  %s4, 16, %s54, [#allocation6]
    $region21: #{tpu_custom_call.1} parent=1 // pred_fallthru
      _
    // Predicated region
    $region22: #{tpu_custom_call.1} parent=1 // pred_check
      _
    $region23: #{tpu_custom_call.1} parent=1 // pred_check_branch
      %58 = sbr.rel (0) target = $region25
    $region24: #{tpu_custom_call.1} parent=1 // pred_region
      _
    $region25: #{tpu_custom_call.1} parent=1 // pred_fallthru
      _
    // Predicated region
    $region26: #{tpu_custom_call.1} parent=1 // pred_check
      _
    $region27: #{tpu_custom_call.1} parent=1 // pred_check_branch
      %60 = sbr.rel (0) target = $region29
    $region28: #{tpu_custom_call.1} parent=1 // pred_region
      %s62 = ssub.s32 16, 16
      %63 = vsyncadd [#allocation6], %s62
      %s65 = sshll.u32 [#allocation7], 4
      %s66 = int_to_ptr.vmem [resolvable:$true] %s65
      %68 = dma.hbm_to_vmem [thread:$0]  %s6, 16, %s66, [#allocation6]
    $region29: #{tpu_custom_call.1} parent=1 // pred_fallthru
      _
    // Predicated region
    $region30: #{tpu_custom_call.1} parent=1 // pred_check
      _
    $region31: #{tpu_custom_call.1} parent=1 // pred_check_branch
      %70 = sbr.rel (0) target = $region33
    $region32: #{tpu_custom_call.1} parent=1 // pred_region
      _
    $region33: #{tpu_custom_call.1} parent=1 // pred_fallthru
      _
    // Predicated region
    $region34: #{tpu_custom_call.1} parent=1 // pred_check
      _
    $region35: #{tpu_custom_call.1} parent=1 // pred_check_branch
      %72 = sbr.rel (0) target = $region37
    $region36: #{tpu_custom_call.1} parent=1 // pred_region
      %s74 = ssub.s32 16, 16
      %75 = vsyncadd [#allocation9], %s74
      %s77 = sshll.u32 [#allocation8], 4
      %s78 = int_to_ptr.vmem [resolvable:$true] %s77
      %80 = dma.hbm_to_vmem [thread:$0]  %s8, 16, %s78, [#allocation9]
    $region37: #{tpu_custom_call.1} parent=1 // pred_fallthru
      _
    // Predicated region
    $region38: #{tpu_custom_call.1} parent=1 // pred_check
      _
    $region39: #{tpu_custom_call.1} parent=1 // pred_check_branch
      %82 = sbr.rel (0) target = $region41
    $region40: #{tpu_custom_call.1} parent=1 // pred_region
      %s84 = ssub.s32 16, 16
      %85 = vsyncadd [#allocation9], %s84
      %s87 = sshll.u32 [#allocation10], 4
      %s88 = int_to_ptr.vmem [resolvable:$true] %s87
      %90 = dma.hbm_to_vmem [thread:$0]  %s9, 16, %s88, [#allocation9]
    $region41: #{tpu_custom_call.1} parent=1 // pred_fallthru
      _
    // Predicated region
    $region42: #{tpu_custom_call.1} parent=1 // pred_check
      _
    $region43: #{tpu_custom_call.1} parent=1 // pred_check_branch
      %92 = sbr.rel (0) target = $region45
    $region44: #{tpu_custom_call.1} parent=1 // pred_region
      %s94 = ssub.s32 16, 16
      %95 = vsyncadd [#allocation12], %s94
      %s97 = sshll.u32 [#allocation11], 4
      %s98 = int_to_ptr.vmem [resolvable:$true] %s97
      %100 = dma.hbm_to_vmem [thread:$0]  %s10, 16, %s98, [#allocation12]
    $region45: #{tpu_custom_call.1} parent=1 // pred_fallthru
      _
    // Predicated region
    $region46: #{tpu_custom_call.1} parent=1 // pred_check
      _
    $region47: #{tpu_custom_call.1} parent=1 // pred_check_branch
      %102 = sbr.rel (0) target = $region49
    $region48: #{tpu_custom_call.1} parent=1 // pred_region
      _
    $region49: #{tpu_custom_call.1} parent=1 // pred_fallthru
      _
    // Predicated region
    $region50: #{tpu_custom_call.1} parent=1 // pred_check
      _
    $region51: #{tpu_custom_call.1} parent=1 // pred_check_branch
      %104 = sbr.rel (0) target = $region53
    $region52: #{tpu_custom_call.1} parent=1 // pred_region
      _
    $region53: #{tpu_custom_call.1} parent=1 // pred_fallthru
      _
    // Predicated region
    $region54: #{tpu_custom_call.1} parent=1 // pred_check
      _
    $region55: #{tpu_custom_call.1} parent=1 // pred_check_branch
      %106 = sbr.rel (0) target = $region57
    $region56: #{tpu_custom_call.1} parent=1 // pred_region
      _
    $region57: #{tpu_custom_call.1} parent=1 // pred_fallthru
      _
    // Predicated region
    $region58: #{tpu_custom_call.1} parent=1 // pred_check
      _
    $region59: #{tpu_custom_call.1} parent=1 // pred_check_branch
      %108 = sbr.rel (0) target = $region61
    $region60: #{tpu_custom_call.1} parent=1 // pred_region
      _
    $region61: #{tpu_custom_call.1} parent=1 // pred_fallthru
      _
    // Predicated region
    $region62: #{tpu_custom_call.1} parent=1 // pred_check
      _
    $region63: #{tpu_custom_call.1} parent=1 // pred_check_branch
      %110 = sbr.rel (0) target = $region65
    $region64: #{tpu_custom_call.1} parent=1 // pred_region
      _
    $region65: #{tpu_custom_call.1} parent=1 // pred_fallthru
      _
    // Predicated region
    $region66: #{tpu_custom_call.1} parent=1 // pred_check
      _
    $region67: #{tpu_custom_call.1} parent=1 // pred_check_branch
      %112 = sbr.rel (0) target = $region69
    $region68: #{tpu_custom_call.1} parent=1 // pred_region
      _
    $region69: #{tpu_custom_call.1} parent=1 // pred_fallthru
      _
    // Predicated region
    $region70: #{tpu_custom_call.1} parent=1 // pred_check
      _
    $region71: #{tpu_custom_call.1} parent=1 // pred_check_branch
      %114 = sbr.rel (0) target = $region73
    $region72: #{tpu_custom_call.1} parent=1 // pred_region
      _
    $region73: #{tpu_custom_call.1} parent=1 // pred_fallthru
      _
    // Predicated region
    $region74: #{tpu_custom_call.1} parent=1 // pred_check
      _
    $region75: #{tpu_custom_call.1} parent=1 // pred_check_branch
      %116 = sbr.rel (0) target = $region77
    $region76: #{tpu_custom_call.1} parent=1 // pred_region
      _
    $region77: #{tpu_custom_call.1} parent=1 // pred_fallthru
      _
    // Predicated region
    $region78: #{tpu_custom_call.1} parent=1 // pred_check
      _
    $region79: #{tpu_custom_call.1} parent=1 // pred_check_branch
      %118 = sbr.rel (0) target = $region81
    $region80: #{tpu_custom_call.1} parent=1 // pred_region
      _
    $region81: #{tpu_custom_call.1} parent=1 // pred_fallthru
      _
    // Predicated region
    $region82: #{tpu_custom_call.1} parent=1 // pred_check
      _
    $region83: #{tpu_custom_call.1} parent=1 // pred_check_branch
      %120 = sbr.rel (0) target = $region85
    $region84: #{tpu_custom_call.1} parent=1 // pred_region
      _
    $region85: #{tpu_custom_call.1} parent=1 // pred_fallthru
      _
    // Predicated region
    $region86: #{tpu_custom_call.1} parent=1 // pred_check
      _
    $region87: #{tpu_custom_call.1} parent=1 // pred_check_branch
      %122 = sbr.rel (0) target = $region89
    $region88: #{tpu_custom_call.1} parent=1 // pred_region
      %123 = dma.done [#allocation3], 16
    $region89: #{tpu_custom_call.1} parent=1 // pred_fallthru
      _
    // Predicated region
    $region90: #{tpu_custom_call.1} parent=1 // pred_check
      _
    $region91: #{tpu_custom_call.1} parent=1 // pred_check_branch
      %125 = sbr.rel (0) target = $region93
    $region92: #{tpu_custom_call.1} parent=1 // pred_region
      %126 = dma.done [#allocation6], 16
    $region93: #{tpu_custom_call.1} parent=1 // pred_fallthru
      _
    // Predicated region
    $region94: #{tpu_custom_call.1} parent=1 // pred_check
      _
    $region95: #{tpu_custom_call.1} parent=1 // pred_check_branch
      %128 = sbr.rel (0) target = $region97
    $region96: #{tpu_custom_call.1} parent=1 // pred_region
      %129 = dma.done [#allocation6], 16
    $region97: #{tpu_custom_call.1} parent=1 // pred_fallthru
      _
    // Predicated region
    $region98: #{tpu_custom_call.1} parent=1 // pred_check
      _
    $region99: #{tpu_custom_call.1} parent=1 // pred_check_branch
      %131 = sbr.rel (0) target = $region101
    $region100: #{tpu_custom_call.1} parent=1 // pred_region
      %132 = dma.done [#allocation9], 16
    $region101: #{tpu_custom_call.1} parent=1 // pred_fallthru
      _
    // Predicated region
    $region102: #{tpu_custom_call.1} parent=1 // pred_check
      _
    $region103: #{tpu_custom_call.1} parent=1 // pred_check_branch
      %134 = sbr.rel (0) target = $region105
    $region104: #{tpu_custom_call.1} parent=1 // pred_region
      %135 = dma.done [#allocation9], 16
    $region105: #{tpu_custom_call.1} parent=1 // pred_fallthru
      _
    // Predicated region
    $region106: #{tpu_custom_call.1} parent=1 // pred_check
      _
    $region107: #{tpu_custom_call.1} parent=1 // pred_check_branch
      %137 = sbr.rel (0) target = $region109
    $region108: #{tpu_custom_call.1} parent=1 // pred_region
      %138 = dma.done [#allocation12], 16
    $region109: #{tpu_custom_call.1} parent=1 // pred_fallthru
      _
    %v140 = vld [vmem:[%s0] sm:$0xff]
    %v141 = vld [vmem:[%s0 + $0x8] sm:$0xff]
    %v142 = vpack.c.bf16 %v141, %v140
    %v143 = vld [vmem:[%s1] sm:$0xf]
    %v144 = vld [vmem:[%s1 + $0x4] sm:$0xf]
    %v145 = vld [vmem:[%s1 + $0x8] sm:$0xf]
    %v146 = vld [vmem:[%s1 + $0xc] sm:$0xf]
    %v147 = vld [vmem:[#allocation2] sm:$0x1]
    %v149 = vlaneseq
    %v150 = vshrl.u32 %v149, 7
    %v151 = vsub.s32 0, %v150
    %v152 = vrot.slane %v147, %v151
    %v158 = vunpack.c.l.b16 %v143
    %v159 = vunpack.c.l.b16 %v144
    %v160 = vunpack.c.l.b16 %v145
    %v161 = vunpack.c.l.b16 %v146
    %v162 = vpack.c.b16 %v159, %v158
    %v163 = vpack.c.b16 %v161, %v160
    %vm166 = vcmask 261120
    %v168 = vsel %vm166, %v142, 0
    %170 = vmatprep.subr.bf16.mxu0 0
    %171 = vmatpush1.bf16.msra.mxu0 0
    %172 = vmatprep.subr.bf16.mxu0 0
    %173 = vmatpush1.bf16.msra.mxu0 0
    %174 = vmatprep.subr.bf16.mxu0 0
    %175 = vmatpush1.bf16.msra.mxu0 0
    %176 = vmatprep.subr.bf16.mxu0 0
    %177 = vmatpush1.bf16.msra.mxu0 0
    %178 = vmatprep.subr.bf16.mxu0 0
    %179 = vmatpush1.bf16.msra.mxu0 0
    %180 = vmatprep.subr.bf16.mxu0 0
    %181 = vmatpush1.bf16.msra.mxu0 0
    %182 = vmatprep.subr.bf16.mxu0 0
    %183 = vmatpush1.bf16.msra.mxu0 %v163
    %184 = vmatprep.subr.bf16.mxu0 0
    %185 = vmatpush1.bf16.msra.mxu0 %v162
    %186 = vmatprep.subr.bf16.mxu0 0
    %187 = vmatpush2.bf16.msra.mxu0 0
    %188 = vmatprep.subr.bf16.mxu0 0
    %189 = vmatpush2.bf16.msra.mxu0 0
    %190 = vmatprep.subr.bf16.mxu0 0
    %191 = vmatpush2.bf16.msra.mxu0 0
    %192 = vmatprep.subr.bf16.mxu0 0
    %193 = vmatpush2.bf16.msra.mxu0 0
    %194 = vmatprep.subr.bf16.mxu0 0
    %195 = vmatpush2.bf16.msra.mxu0 0
    %196 = vmatprep.subr.bf16.mxu0 0
    %197 = vmatpush2.bf16.msra.mxu0 0
    %198 = vmatprep.subr.bf16.mxu0 0
    %199 = vmatpush2.bf16.msra.mxu0 0
    %200 = vmatprep.subr.bf16.mxu0 0
    %201 = vmatpush2.bf16.msra.mxu0 0
    %202 = vmatprep.mubr.bf16.mxu0 0
    %203 = vmatmul.mubr.bf16.gmra.mxu0 %v168
    %v204 = vpop.f32.mrf.mxu0
    %v205 = vadd.f32 %v152, %v204
    %v206 = vpop.f32.mrf.mxu0
    %v207 = vpop.f32.mrf.mxu0
    %v208 = vadd.f32 %v152, %v207
    %v209 = vpop.f32.mrf.mxu0
    %210 = vdwg.mxu0
    %v211 = vld [vmem:[%s3] sm:$0xf]
    %v212 = vld [vmem:[%s3 + $0x4] sm:$0xf]
    %v213 = vld [vmem:[%s3 + $0x8] sm:$0xf]
    %v214 = vld [vmem:[%s3 + $0xc] sm:$0xf]
    %v215 = vld [vmem:[#allocation5] sm:$0x1]
    %v217 = vlaneseq
    %v218 = vshrl.u32 %v217, 7
    %v219 = vsub.s32 0, %v218
    %v220 = vrot.slane %v215, %v219
    %v226 = vunpack.c.l.b16 %v211
    %v227 = vunpack.c.l.b16 %v212
    %v228 = vunpack.c.l.b16 %v213
    %v229 = vunpack.c.l.b16 %v214
    %v230 = vpack.c.b16 %v227, %v226
    %v231 = vpack.c.b16 %v229, %v228
    %234 = vmatprep.subr.bf16.mxu0 0
    %235 = vmatpush1.bf16.msra.mxu0 0
    %236 = vmatprep.subr.bf16.mxu0 0
    %237 = vmatpush1.bf16.msra.mxu0 0
    %238 = vmatprep.subr.bf16.mxu0 0
    %239 = vmatpush1.bf16.msra.mxu0 0
    %240 = vmatprep.subr.bf16.mxu0 0
    %241 = vmatpush1.bf16.msra.mxu0 0
    %242 = vmatprep.subr.bf16.mxu0 0
    %243 = vmatpush1.bf16.msra.mxu0 0
    %244 = vmatprep.subr.bf16.mxu0 0
    %245 = vmatpush1.bf16.msra.mxu0 0
    %246 = vmatprep.subr.bf16.mxu0 0
    %247 = vmatpush1.bf16.msra.mxu0 %v231
    %248 = vmatprep.subr.bf16.mxu0 0
    %249 = vmatpush1.bf16.msra.mxu0 %v230
    %250 = vmatprep.subr.bf16.mxu0 0
    %251 = vmatpush2.bf16.msra.mxu0 0
    %252 = vmatprep.subr.bf16.mxu0 0
    %253 = vmatpush2.bf16.msra.mxu0 0
    %254 = vmatprep.subr.bf16.mxu0 0
    %255 = vmatpush2.bf16.msra.mxu0 0
    %256 = vmatprep.subr.bf16.mxu0 0
    %257 = vmatpush2.bf16.msra.mxu0 0
    %258 = vmatprep.subr.bf16.mxu0 0
    %259 = vmatpush2.bf16.msra.mxu0 0
    %260 = vmatprep.subr.bf16.mxu0 0
    %261 = vmatpush2.bf16.msra.mxu0 0
    %262 = vmatprep.subr.bf16.mxu0 0
    %263 = vmatpush2.bf16.msra.mxu0 0
    %264 = vmatprep.subr.bf16.mxu0 0
    %265 = vmatpush2.bf16.msra.mxu0 0
    %266 = vmatprep.mubr.bf16.mxu0 0
    %267 = vmatmul.mubr.bf16.gmra.mxu0 %v168
    %v268 = vpop.f32.mrf.mxu0
    %v269 = vadd.f32 %v220, %v268
    %v270 = vpop.f32.mrf.mxu0
    %v271 = vpop.f32.mrf.mxu0
    %v272 = vadd.f32 %v220, %v271
    %v273 = vpop.f32.mrf.mxu0
    %274 = vdwg.mxu0
    %v275 = vld [vmem:[%s5] sm:$0xf]
    %v276 = vld [vmem:[%s5 + $0x4] sm:$0xf]
    %v277 = vld [vmem:[%s5 + $0x8] sm:$0xf]
    %v278 = vld [vmem:[%s5 + $0xc] sm:$0xf]
    %v279 = vld [vmem:[#allocation7] sm:$0x1]
    %v281 = vlaneseq
    %v282 = vshrl.u32 %v281, 7
    %v283 = vsub.s32 0, %v282
    %v284 = vrot.slane %v279, %v283
    %v290 = vunpack.c.l.b16 %v275
    %v291 = vunpack.c.l.b16 %v276
    %v292 = vunpack.c.l.b16 %v277
    %v293 = vunpack.c.l.b16 %v278
    %v294 = vpack.c.b16 %v291, %v290
    %v295 = vpack.c.b16 %v293, %v292
    %298 = vmatprep.subr.bf16.mxu0 0
    %299 = vmatpush1.bf16.msra.mxu0 0
    %300 = vmatprep.subr.bf16.mxu0 0
    %301 = vmatpush1.bf16.msra.mxu0 0
    %302 = vmatprep.subr.bf16.mxu0 0
    %303 = vmatpush1.bf16.msra.mxu0 0
    %304 = vmatprep.subr.bf16.mxu0 0
    %305 = vmatpush1.bf16.msra.mxu0 0
    %306 = vmatprep.subr.bf16.mxu0 0
    %307 = vmatpush1.bf16.msra.mxu0 0
    %308 = vmatprep.subr.bf16.mxu0 0
    %309 = vmatpush1.bf16.msra.mxu0 0
    %310 = vmatprep.subr.bf16.mxu0 0
    %311 = vmatpush1.bf16.msra.mxu0 %v295
    %312 = vmatprep.subr.bf16.mxu0 0
    %313 = vmatpush1.bf16.msra.mxu0 %v294
    %314 = vmatprep.subr.bf16.mxu0 0
    %315 = vmatpush2.bf16.msra.mxu0 0
    %316 = vmatprep.subr.bf16.mxu0 0
    %317 = vmatpush2.bf16.msra.mxu0 0
    %318 = vmatprep.subr.bf16.mxu0 0
    %319 = vmatpush2.bf16.msra.mxu0 0
    %320 = vmatprep.subr.bf16.mxu0 0
    %321 = vmatpush2.bf16.msra.mxu0 0
    %322 = vmatprep.subr.bf16.mxu0 0
    %323 = vmatpush2.bf16.msra.mxu0 0
    %324 = vmatprep.subr.bf16.mxu0 0
    %325 = vmatpush2.bf16.msra.mxu0 0
    %326 = vmatprep.subr.bf16.mxu0 0
    %327 = vmatpush2.bf16.msra.mxu0 0
    %328 = vmatprep.subr.bf16.mxu0 0
    %329 = vmatpush2.bf16.msra.mxu0 0
    %330 = vmatprep.mubr.bf16.mxu0 0
    %331 = vmatmul.mubr.bf16.gmra.mxu0 %v168
    %v332 = vpop.f32.mrf.mxu0
    %v333 = vadd.f32 %v284, %v332
    %v334 = vpop.f32.mrf.mxu0
    %v335 = vpop.f32.mrf.mxu0
    %v336 = vadd.f32 %v284, %v335
    %v337 = vpop.f32.mrf.mxu0
    %338 = vdwg.mxu0
    %v339 = vpack.c.bf16 %v205, %v205
    %v340 = vpack.c.bf16 %v208, %v208
    %v341 = vpack.c.bf16 %v269, %v269
    %v342 = vpack.c.bf16 %v272, %v272
    %v343 = vpack.c.bf16 %v333, %v333
    %v344 = vpack.c.bf16 %v336, %v336
    %v345 = vlaneseq
    %v346 = vand.u32 %v345, 127
    %vm347 = vcmp.ge.s32.totalorder %v346, 0
    %vm348 = vcmp.ge.s32.totalorder %v346, 8
    %vm349 = vcmp.ge.s32.totalorder %v346, 16
    %vm350 = vcmp.ge.s32.totalorder %v346, 24
    %vm351 = vcmp.lt.s32.totalorder %v346, 8
    %vm352 = vcmp.lt.s32.totalorder %v346, 16
    %vm353 = vcmp.lt.s32.totalorder %v346, 24
    %vm354 = vcmp.lt.s32.totalorder %v346, 32
    %vm355 = vmand %vm347, %vm351
    %vm356 = vmand %vm348, %vm352
    %vm357 = vmand %vm349, %vm353
    %vm358 = vmand %vm350, %vm354
    %v359 = vsel %vm355, 1.0, 0.0
    %v360 = vsel %vm356, 1.0, 0.0
    %v361 = vsel %vm357, 1.0, 0.0
    %v362 = vsel %vm358, 1.0, 0.0
    %v363 = vpack.c.bf16 %v360, %v359
    %v364 = vpack.c.bf16 %v362, %v361
    %v367 = vunpack.c.l.b16 %v363
    %v368 = vunpack.c.h.b16 %v363
    %v369 = vunpack.c.l.b16 %v364
    %v370 = vunpack.c.h.b16 %v364
    %v371 = vpack.c.b16 %v367, %v367
    %v372 = vpack.c.b16 %v368, %v368
    %v373 = vpack.c.b16 %v369, %v369
    %v374 = vpack.c.b16 %v370, %v370
    %v379 = vmul.bf16 %v339, %v371
    %v380 = vmul.bf16 %v339, %v372
    %v381 = vmul.bf16 %v339, %v373
    %v382 = vmul.bf16 %v339, %v374
    %v383 = vmul.bf16 %v340, %v371
    %v384 = vmul.bf16 %v340, %v372
    %v385 = vmul.bf16 %v340, %v373
    %v386 = vmul.bf16 %v340, %v374
    %v391 = vunpack.c.l.b16 %v379
    %v392 = vunpack.c.l.b16 %v380
    %v393 = vunpack.c.l.b16 %v381
    %v394 = vunpack.c.l.b16 %v382
    %v395 = vpack.c.b16 %v392, %v391
    %v396 = vpack.c.b16 %v394, %v393
    %v398 = vsel %vm166, %v395, 0
    %v401 = vsel %vm166, %v396, 0
    %v404 = vsel %vm166, %v341, 0
    %406 = vmatprep.subr.bf16.mxu0 0
    %407 = vmatpush1.bf16.xpose.msra.mxu0 0
    %408 = vmatprep.subr.bf16.mxu0 0
    %409 = vmatpush1.bf16.xpose.msra.mxu0 0
    %410 = vmatprep.subr.bf16.mxu0 0
    %411 = vmatpush1.bf16.xpose.msra.mxu0 0
    %412 = vmatprep.subr.bf16.mxu0 0
    %413 = vmatpush1.bf16.xpose.msra.mxu0 0
    %414 = vmatprep.subr.bf16.mxu0 0
    %415 = vmatpush1.bf16.xpose.msra.mxu0 0
    %416 = vmatprep.subr.bf16.mxu0 0
    %417 = vmatpush1.bf16.xpose.msra.mxu0 0
    %418 = vmatprep.subr.bf16.mxu0 0
    %419 = vmatpush1.bf16.xpose.msra.mxu0 0
    %420 = vmatprep.subr.bf16.mxu0 0
    %421 = vmatpush1.bf16.xpose.msra.mxu0 %v404
    %422 = vmatprep.subr.bf16.mxu0 0
    %423 = vmatpush2.bf16.xpose.msra.mxu0 0
    %424 = vmatprep.subr.bf16.mxu0 0
    %425 = vmatpush2.bf16.xpose.msra.mxu0 0
    %426 = vmatprep.subr.bf16.mxu0 0
    %427 = vmatpush2.bf16.xpose.msra.mxu0 0
    %428 = vmatprep.subr.bf16.mxu0 0
    %429 = vmatpush2.bf16.xpose.msra.mxu0 0
    %430 = vmatprep.subr.bf16.mxu0 0
    %431 = vmatpush2.bf16.xpose.msra.mxu0 0
    %432 = vmatprep.subr.bf16.mxu0 0
    %433 = vmatpush2.bf16.xpose.msra.mxu0 0
    %434 = vmatprep.subr.bf16.mxu0 0
    %435 = vmatpush2.bf16.xpose.msra.mxu0 0
    %436 = vmatprep.subr.bf16.mxu0 0
    %437 = vmatpush2.bf16.xpose.msra.mxu0 0
    %438 = vmatprep.mubr.bf16.mxu0 0
    %439 = vmatmul.mubr.bf16.gmra.mxu0 %v398
    %v440 = vpop.f32.mrf.mxu0
    %v441 = vadd.f32 0.0, %v440
    %v442 = vpop.f32.mrf.mxu0
    %v443 = vpop.f32.mrf.mxu0
    %v444 = vadd.f32 0.0, %v443
    %v445 = vpop.f32.mrf.mxu0
    %446 = vmatprep.mubr.bf16.mxu0 0
    %447 = vmatmul.mubr.bf16.gmra.mxu0 %v401
    %v448 = vpop.f32.mrf.mxu0
    %v449 = vadd.f32 0.0, %v448
    %v450 = vpop.f32.mrf.mxu0
    %v451 = vpop.f32.mrf.mxu0
    %v452 = vadd.f32 0.0, %v451
    %v453 = vpop.f32.mrf.mxu0
    %454 = vdwg.mxu0
    %v459 = vunpack.c.l.b16 %v383
    %v460 = vunpack.c.l.b16 %v384
    %v461 = vunpack.c.l.b16 %v385
    %v462 = vunpack.c.l.b16 %v386
    %v463 = vpack.c.b16 %v460, %v459
    %v464 = vpack.c.b16 %v462, %v461
    %v466 = vsel %vm166, %v463, 0
    %v469 = vsel %vm166, %v464, 0
    %v472 = vsel %vm166, %v342, 0
    %474 = vmatprep.subr.bf16.mxu0 0
    %475 = vmatpush1.bf16.xpose.msra.mxu0 0
    %476 = vmatprep.subr.bf16.mxu0 0
    %477 = vmatpush1.bf16.xpose.msra.mxu0 0
    %478 = vmatprep.subr.bf16.mxu0 0
    %479 = vmatpush1.bf16.xpose.msra.mxu0 0
    %480 = vmatprep.subr.bf16.mxu0 0
    %481 = vmatpush1.bf16.xpose.msra.mxu0 0
    %482 = vmatprep.subr.bf16.mxu0 0
    %483 = vmatpush1.bf16.xpose.msra.mxu0 0
    %484 = vmatprep.subr.bf16.mxu0 0
    %485 = vmatpush1.bf16.xpose.msra.mxu0 0
    %486 = vmatprep.subr.bf16.mxu0 0
    %487 = vmatpush1.bf16.xpose.msra.mxu0 0
    %488 = vmatprep.subr.bf16.mxu0 0
    %489 = vmatpush1.bf16.xpose.msra.mxu0 %v472
    %490 = vmatprep.subr.bf16.mxu0 0
    %491 = vmatpush2.bf16.xpose.msra.mxu0 0
    %492 = vmatprep.subr.bf16.mxu0 0
    %493 = vmatpush2.bf16.xpose.msra.mxu0 0
    %494 = vmatprep.subr.bf16.mxu0 0
    %495 = vmatpush2.bf16.xpose.msra.mxu0 0
    %496 = vmatprep.subr.bf16.mxu0 0
    %497 = vmatpush2.bf16.xpose.msra.mxu0 0
    %498 = vmatprep.subr.bf16.mxu0 0
    %499 = vmatpush2.bf16.xpose.msra.mxu0 0
    %500 = vmatprep.subr.bf16.mxu0 0
    %501 = vmatpush2.bf16.xpose.msra.mxu0 0
    %502 = vmatprep.subr.bf16.mxu0 0
    %503 = vmatpush2.bf16.xpose.msra.mxu0 0
    %504 = vmatprep.subr.bf16.mxu0 0
    %505 = vmatpush2.bf16.xpose.msra.mxu0 0
    %506 = vmatprep.mubr.bf16.mxu0 0
    %507 = vmatmul.mubr.bf16.gmra.mxu0 %v466
    %v508 = vpop.f32.mrf.mxu0
    %v509 = vadd.f32 0.0, %v508
    %v510 = vpop.f32.mrf.mxu0
    %v511 = vpop.f32.mrf.mxu0
    %v512 = vadd.f32 0.0, %v511
    %v513 = vpop.f32.mrf.mxu0
    %514 = vmatprep.mubr.bf16.mxu0 0
    %515 = vmatmul.mubr.bf16.gmra.mxu0 %v469
    %v516 = vpop.f32.mrf.mxu0
    %v517 = vadd.f32 0.0, %v516
    %v518 = vpop.f32.mrf.mxu0
    %v519 = vpop.f32.mrf.mxu0
    %v520 = vadd.f32 0.0, %v519
    %v521 = vpop.f32.mrf.mxu0
    %522 = vdwg.mxu0
    %vm523 = vcmask 64512
    %v524 = vsel %vm523, %v441, -inf
    %525 = vmax.xlane.f32.xlu0 %v524
    %v526 = vpop.xlane.xlu0 %525
    %v527 = vsel %vm523, %v444, -inf
    %528 = vmax.xlane.f32.xlu0 %v527
    %v529 = vpop.xlane.xlu0 %528
    %v530 = vsel %vm523, %v449, -inf
    %531 = vmax.xlane.f32.xlu0 %v530
    %v532 = vpop.xlane.xlu0 %531
    %v533 = vsel %vm523, %v452, -inf
    %534 = vmax.xlane.f32.xlu0 %v533
    %v535 = vpop.xlane.xlu0 %534
    %v536 = vsel %vm523, %v509, -inf
    %537 = vmax.xlane.f32.xlu0 %v536
    %v538 = vpop.xlane.xlu0 %537
    %v539 = vsel %vm523, %v512, -inf
    %540 = vmax.xlane.f32.xlu0 %v539
    %v541 = vpop.xlane.xlu0 %540
    %v542 = vsel %vm523, %v517, -inf
    %543 = vmax.xlane.f32.xlu0 %v542
    %v544 = vpop.xlane.xlu0 %543
    %v545 = vsel %vm523, %v520, -inf
    %546 = vmax.xlane.f32.xlu0 %v545
    %v547 = vpop.xlane.xlu0 %546
    %v548 = vsub.f32 %v441, %v526
    %v549 = vsub.f32 %v444, %v529
    %v550 = vsub.f32 %v449, %v532
    %v551 = vsub.f32 %v452, %v535
    %v552 = vsub.f32 %v509, %v538
    %v553 = vsub.f32 %v512, %v541
    %v554 = vsub.f32 %v517, %v544
    %v555 = vsub.f32 %v520, %v547
    %v556 = vmul.f32 %v548, 1.442695
    %v557 = vpow.pop %v556
    %v558 = vmul.f32 %v549, 1.442695
    %v559 = vpow.pop %v558
    %v560 = vmul.f32 %v550, 1.442695
    %v561 = vpow.pop %v560
    %v562 = vmul.f32 %v551, 1.442695
    %v563 = vpow.pop %v562
    %v564 = vmul.f32 %v552, 1.442695
    %v565 = vpow.pop %v564
    %v566 = vmul.f32 %v553, 1.442695
    %v567 = vpow.pop %v566
    %v568 = vmul.f32 %v554, 1.442695
    %v569 = vpow.pop %v568
    %v570 = vmul.f32 %v555, 1.442695
    %v571 = vpow.pop %v570
    %v572 = vsel %vm523, %v557, 0.0
    %573 = vadd.xlane.f32.xlu0 %v572
    %v574 = vpop.xlane.xlu0 %573
    %v575 = vsel %vm523, %v559, 0.0
    %576 = vadd.xlane.f32.xlu0 %v575
    %v577 = vpop.xlane.xlu0 %576
    %v578 = vsel %vm523, %v561, 0.0
    %579 = vadd.xlane.f32.xlu0 %v578
    %v580 = vpop.xlane.xlu0 %579
    %v581 = vsel %vm523, %v563, 0.0
    %582 = vadd.xlane.f32.xlu0 %v581
    %v583 = vpop.xlane.xlu0 %582
    %v584 = vsel %vm523, %v565, 0.0
    %585 = vadd.xlane.f32.xlu0 %v584
    %v586 = vpop.xlane.xlu0 %585
    %v587 = vsel %vm523, %v567, 0.0
    %588 = vadd.xlane.f32.xlu0 %v587
    %v589 = vpop.xlane.xlu0 %588
    %v590 = vsel %vm523, %v569, 0.0
    %591 = vadd.xlane.f32.xlu0 %v590
    %v592 = vpop.xlane.xlu0 %591
    %v593 = vsel %vm523, %v571, 0.0
    %594 = vadd.xlane.f32.xlu0 %v593
    %v595 = vpop.xlane.xlu0 %594
    %v596 = vrcp.pop %v574
    %v597 = vrcp.pop %v577
    %v598 = vrcp.pop %v580
    %v599 = vrcp.pop %v583
    %v600 = vrcp.pop %v586
    %v601 = vrcp.pop %v589
    %v602 = vrcp.pop %v592
    %v603 = vrcp.pop %v595
    %v604 = vmul.f32 %v557, %v596
    %v605 = vmul.f32 %v559, %v597
    %v606 = vmul.f32 %v561, %v598
    %v607 = vmul.f32 %v563, %v599
    %v608 = vmul.f32 %v565, %v600
    %v609 = vmul.f32 %v567, %v601
    %v610 = vmul.f32 %v569, %v602
    %v611 = vmul.f32 %v571, %v603
    %v612 = vpack.c.bf16 %v605, %v604
    %v613 = vpack.c.bf16 %v607, %v606
    %v614 = vpack.c.bf16 %v609, %v608
    %v615 = vpack.c.bf16 %v611, %v610
    %v617 = vsel %vm523, %v612, 0
    %v620 = vsel %vm523, %v613, 0
    %vm622 = vcmask 1043456
    %v624 = vsel %vm622, %v343, 0
    %626 = vmatprep.subr.bf16.mxu0 0
    %627 = vmatpush1.bf16.msra.mxu0 0
    %628 = vmatprep.subr.bf16.mxu0 0
    %629 = vmatpush1.bf16.msra.mxu0 0
    %630 = vmatprep.subr.bf16.mxu0 0
    %631 = vmatpush1.bf16.msra.mxu0 0
    %632 = vmatprep.subr.bf16.mxu0 0
    %633 = vmatpush1.bf16.msra.mxu0 0
    %634 = vmatprep.subr.bf16.mxu0 0
    %635 = vmatpush1.bf16.msra.mxu0 0
    %636 = vmatprep.subr.bf16.mxu0 0
    %637 = vmatpush1.bf16.msra.mxu0 0
    %638 = vmatprep.subr.bf16.mxu0 0
    %639 = vmatpush1.bf16.msra.mxu0 0
    %640 = vmatprep.subr.bf16.mxu0 0
    %641 = vmatpush1.bf16.msra.mxu0 %v624
    %642 = vmatprep.subr.bf16.mxu0 0
    %643 = vmatpush2.bf16.msra.mxu0 0
    %644 = vmatprep.subr.bf16.mxu0 0
    %645 = vmatpush2.bf16.msra.mxu0 0
    %646 = vmatprep.subr.bf16.mxu0 0
    %647 = vmatpush2.bf16.msra.mxu0 0
    %648 = vmatprep.subr.bf16.mxu0 0
    %649 = vmatpush2.bf16.msra.mxu0 0
    %650 = vmatprep.subr.bf16.mxu0 0
    %651 = vmatpush2.bf16.msra.mxu0 0
    %652 = vmatprep.subr.bf16.mxu0 0
    %653 = vmatpush2.bf16.msra.mxu0 0
    %654 = vmatprep.subr.bf16.mxu0 0
    %655 = vmatpush2.bf16.msra.mxu0 0
    %656 = vmatprep.subr.bf16.mxu0 0
    %657 = vmatpush2.bf16.msra.mxu0 0
    %658 = vmatprep.mubr.bf16.mxu0 0
    %659 = vmatmul.mubr.bf16.gmra.mxu0 %v617
    %v660 = vpop.f32.mrf.mxu0
    %v661 = vadd.f32 0.0, %v660
    %v662 = vpop.f32.mrf.mxu0
    %v663 = vpop.f32.mrf.mxu0
    %v664 = vadd.f32 0.0, %v663
    %v665 = vpop.f32.mrf.mxu0
    %666 = vmatprep.mubr.bf16.mxu0 0
    %667 = vmatmul.mubr.bf16.gmra.mxu0 %v620
    %v668 = vpop.f32.mrf.mxu0
    %v669 = vadd.f32 0.0, %v668
    %v670 = vpop.f32.mrf.mxu0
    %v671 = vpop.f32.mrf.mxu0
    %v672 = vadd.f32 0.0, %v671
    %v673 = vpop.f32.mrf.mxu0
    %674 = vdwg.mxu0
    %v676 = vsel %vm523, %v614, 0
    %v679 = vsel %vm523, %v615, 0
    %v682 = vsel %vm622, %v344, 0
    %684 = vmatprep.subr.bf16.mxu0 0
    %685 = vmatpush1.bf16.msra.mxu0 0
    %686 = vmatprep.subr.bf16.mxu0 0
    %687 = vmatpush1.bf16.msra.mxu0 0
    %688 = vmatprep.subr.bf16.mxu0 0
    %689 = vmatpush1.bf16.msra.mxu0 0
    %690 = vmatprep.subr.bf16.mxu0 0
    %691 = vmatpush1.bf16.msra.mxu0 0
    %692 = vmatprep.subr.bf16.mxu0 0
    %693 = vmatpush1.bf16.msra.mxu0 0
    %694 = vmatprep.subr.bf16.mxu0 0
    %695 = vmatpush1.bf16.msra.mxu0 0
    %696 = vmatprep.subr.bf16.mxu0 0
    %697 = vmatpush1.bf16.msra.mxu0 0
    %698 = vmatprep.subr.bf16.mxu0 0
    %699 = vmatpush1.bf16.msra.mxu0 %v682
    %700 = vmatprep.subr.bf16.mxu0 0
    %701 = vmatpush2.bf16.msra.mxu0 0
    %702 = vmatprep.subr.bf16.mxu0 0
    %703 = vmatpush2.bf16.msra.mxu0 0
    %704 = vmatprep.subr.bf16.mxu0 0
    %705 = vmatpush2.bf16.msra.mxu0 0
    %706 = vmatprep.subr.bf16.mxu0 0
    %707 = vmatpush2.bf16.msra.mxu0 0
    %708 = vmatprep.subr.bf16.mxu0 0
    %709 = vmatpush2.bf16.msra.mxu0 0
    %710 = vmatprep.subr.bf16.mxu0 0
    %711 = vmatpush2.bf16.msra.mxu0 0
    %712 = vmatprep.subr.bf16.mxu0 0
    %713 = vmatpush2.bf16.msra.mxu0 0
    %714 = vmatprep.subr.bf16.mxu0 0
    %715 = vmatpush2.bf16.msra.mxu0 0
    %716 = vmatprep.mubr.bf16.mxu0 0
    %717 = vmatmul.mubr.bf16.gmra.mxu0 %v676
    %v718 = vpop.f32.mrf.mxu0
    %v719 = vadd.f32 0.0, %v718
    %v720 = vpop.f32.mrf.mxu0
    %v721 = vpop.f32.mrf.mxu0
    %v722 = vadd.f32 0.0, %v721
    %v723 = vpop.f32.mrf.mxu0
    %724 = vmatprep.mubr.bf16.mxu0 0
    %725 = vmatmul.mubr.bf16.gmra.mxu0 %v679
    %v726 = vpop.f32.mrf.mxu0
    %v727 = vadd.f32 0.0, %v726
    %v728 = vpop.f32.mrf.mxu0
    %v729 = vpop.f32.mrf.mxu0
    %v730 = vadd.f32 0.0, %v729
    %v731 = vpop.f32.mrf.mxu0
    %732 = vdwg.mxu0
    %v733 = vmul.f32 %v661, %v359
    %v734 = vmul.f32 %v664, %v360
    %v735 = vmul.f32 %v669, %v361
    %v736 = vmul.f32 %v672, %v362
    %v737 = vmul.f32 %v719, %v359
    %v738 = vmul.f32 %v722, %v360
    %v739 = vmul.f32 %v727, %v361
    %v740 = vmul.f32 %v730, %v362
    %v741 = vadd.f32 %v733, %v734
    %v742 = vadd.f32 %v737, %v738
    %v743 = vadd.f32 %v741, %v735
    %v744 = vadd.f32 %v742, %v739
    %v745 = vadd.f32 %v743, %v736
    %v746 = vadd.f32 %v744, %v740
    %v747 = vpack.c.bf16 %v746, %v745
    %v748 = vld [vmem:[%s7] sm:$0xf]
    %v749 = vld [vmem:[%s7 + $0x4] sm:$0xf]
    %v750 = vld [vmem:[%s7 + $0x8] sm:$0xf]
    %v751 = vld [vmem:[%s7 + $0xc] sm:$0xf]
    %v752 = vld [vmem:[#allocation8] sm:$0x1]
    %v754 = vlaneseq
    %v755 = vshrl.u32 %v754, 7
    %v756 = vsub.s32 0, %v755
    %v757 = vrot.slane %v752, %v756
    %v763 = vunpack.c.l.b16 %v748
    %v764 = vunpack.c.l.b16 %v749
    %v765 = vunpack.c.l.b16 %v750
    %v766 = vunpack.c.l.b16 %v751
    %v767 = vpack.c.b16 %v764, %v763
    %v768 = vpack.c.b16 %v766, %v765
    %v772 = vsel %vm166, %v747, 0
    %774 = vmatprep.subr.bf16.mxu0 0
    %775 = vmatpush1.bf16.msra.mxu0 0
    %776 = vmatprep.subr.bf16.mxu0 0
    %777 = vmatpush1.bf16.msra.mxu0 0
    %778 = vmatprep.subr.bf16.mxu0 0
    %779 = vmatpush1.bf16.msra.mxu0 0
    %780 = vmatprep.subr.bf16.mxu0 0
    %781 = vmatpush1.bf16.msra.mxu0 0
    %782 = vmatprep.subr.bf16.mxu0 0
    %783 = vmatpush1.bf16.msra.mxu0 0
    %784 = vmatprep.subr.bf16.mxu0 0
    %785 = vmatpush1.bf16.msra.mxu0 0
    %786 = vmatprep.subr.bf16.mxu0 0
    %787 = vmatpush1.bf16.msra.mxu0 %v768
    %788 = vmatprep.subr.bf16.mxu0 0
    %789 = vmatpush1.bf16.msra.mxu0 %v767
    %790 = vmatprep.subr.bf16.mxu0 0
    %791 = vmatpush2.bf16.msra.mxu0 0
    %792 = vmatprep.subr.bf16.mxu0 0
    %793 = vmatpush2.bf16.msra.mxu0 0
    %794 = vmatprep.subr.bf16.mxu0 0
    %795 = vmatpush2.bf16.msra.mxu0 0
    %796 = vmatprep.subr.bf16.mxu0 0
    %797 = vmatpush2.bf16.msra.mxu0 0
    %798 = vmatprep.subr.bf16.mxu0 0
    %799 = vmatpush2.bf16.msra.mxu0 0
    %800 = vmatprep.subr.bf16.mxu0 0
    %801 = vmatpush2.bf16.msra.mxu0 0
    %802 = vmatprep.subr.bf16.mxu0 0
    %803 = vmatpush2.bf16.msra.mxu0 0
    %804 = vmatprep.subr.bf16.mxu0 0
    %805 = vmatpush2.bf16.msra.mxu0 0
    %806 = vmatprep.mubr.bf16.mxu0 0
    %807 = vmatmul.mubr.bf16.gmra.mxu0 %v772
    %v808 = vpop.f32.mrf.mxu0
    %v809 = vadd.f32 %v757, %v808
    %v810 = vpop.f32.mrf.mxu0
    %v811 = vpop.f32.mrf.mxu0
    %v812 = vadd.f32 %v757, %v811
    %v813 = vpop.f32.mrf.mxu0
    %814 = vdwg.mxu0
    %v815 = vadd.f32 %v140, %v809
    %v816 = vadd.f32 %v141, %v812
    %v817 = vld [vmem:[#allocation10] sm:$0x1]
    %v818 = vld [vmem:[#allocation11] sm:$0x1]
    %v819 = vsel %vm166, %v815, 0.0
    %820 = vadd.xlane.f32.xlu0 %v819
    %v821 = vpop.xlane.xlu0 %820
    %v822 = vsel %vm166, %v816, 0.0
    %823 = vadd.xlane.f32.xlu0 %v822
    %v824 = vpop.xlane.xlu0 %823
    %v825 = vrcp.pop 32.0
    %v826 = vmul.f32 %v821, %v825
    %v827 = vmul.f32 %v824, %v825
    %v828 = vsub.f32 %v815, %v826
    %v829 = vsub.f32 %v816, %v827
    %v830 = vmul.f32 %v828, %v828
    %v831 = vmul.f32 %v829, %v829
    %v832 = vsel %vm166, %v830, 0.0
    %833 = vadd.xlane.f32.xlu0 %v832
    %v834 = vpop.xlane.xlu0 %833
    %v835 = vsel %vm166, %v831, 0.0
    %836 = vadd.xlane.f32.xlu0 %v835
    %v837 = vpop.xlane.xlu0 %836
    %v838 = vmul.f32 %v834, %v825
    %v839 = vmul.f32 %v837, %v825
    %v840 = vadd.f32 %v838, 1e-05
    %v841 = vadd.f32 %v839, 1e-05
    %v842 = vrsqrt.pop %v840
    %v843 = vrsqrt.pop %v841
    %v844 = vmul.f32 %v828, %v842
    %v845 = vmul.f32 %v829, %v843
    %v847 = vlaneseq
    %v848 = vshrl.u32 %v847, 7
    %v849 = vsub.s32 0, %v848
    %v850 = vrot.slane %v817, %v849
    %v852 = vmul.f32 %v844, %v850
    %v853 = vmul.f32 %v845, %v850
    %v855 = vlaneseq
    %v856 = vshrl.u32 %v855, 7
    %v857 = vsub.s32 0, %v856
    %v858 = vrot.slane %v818, %v857
    %v860 = vadd.f32 %v852, %v858
    %v861 = vadd.f32 %v853, %v858
    %v862 = vpack.c.bf16 %v861, %v860
    %v863 = vld [vmem:[%s11] sm:$0xf]
    %v864 = vld [vmem:[%s11 + $0x4] sm:$0xf]
    %v865 = vld [vmem:[%s11 + $0x8] sm:$0xf]
    %v866 = vld [vmem:[%s11 + $0xc] sm:$0xf]
    %v867 = vld [vmem:[%s12] sm:$0x1]
    %v869 = vlaneseq
    %v870 = vshrl.u32 %v869, 7
    %v871 = vsub.s32 0, %v870
    %v872 = vrot.slane %v867, %v871
    %v878 = vunpack.c.l.b16 %v863
    %v879 = vunpack.c.l.b16 %v864
    %v880 = vunpack.c.l.b16 %v865
    %v881 = vunpack.c.l.b16 %v866
    %v882 = vpack.c.b16 %v879, %v878
    %v883 = vpack.c.b16 %v881, %v880
    %v887 = vsel %vm166, %v862, 0
    %889 = vmatprep.subr.bf16.mxu0 0
    %890 = vmatpush1.bf16.msra.mxu0 0
    %891 = vmatprep.subr.bf16.mxu0 0
    %892 = vmatpush1.bf16.msra.mxu0 0
    %893 = vmatprep.subr.bf16.mxu0 0
    %894 = vmatpush1.bf16.msra.mxu0 0
    %895 = vmatprep.subr.bf16.mxu0 0
    %896 = vmatpush1.bf16.msra.mxu0 0
    %897 = vmatprep.subr.bf16.mxu0 0
    %898 = vmatpush1.bf16.msra.mxu0 0
    %899 = vmatprep.subr.bf16.mxu0 0
    %900 = vmatpush1.bf16.msra.mxu0 0
    %901 = vmatprep.subr.bf16.mxu0 0
    %902 = vmatpush1.bf16.msra.mxu0 %v883
    %903 = vmatprep.subr.bf16.mxu0 0
    %904 = vmatpush1.bf16.msra.mxu0 %v882
    %905 = vmatprep.subr.bf16.mxu0 0
    %906 = vmatpush2.bf16.msra.mxu0 0
    %907 = vmatprep.subr.bf16.mxu0 0
    %908 = vmatpush2.bf16.msra.mxu0 0
    %909 = vmatprep.subr.bf16.mxu0 0
    %910 = vmatpush2.bf16.msra.mxu0 0
    %911 = vmatprep.subr.bf16.mxu0 0
    %912 = vmatpush2.bf16.msra.mxu0 0
    %913 = vmatprep.subr.bf16.mxu0 0
    %914 = vmatpush2.bf16.msra.mxu0 0
    %915 = vmatprep.subr.bf16.mxu0 0
    %916 = vmatpush2.bf16.msra.mxu0 0
    %917 = vmatprep.subr.bf16.mxu0 0
    %918 = vmatpush2.bf16.msra.mxu0 0
    %919 = vmatprep.subr.bf16.mxu0 0
    %920 = vmatpush2.bf16.msra.mxu0 0
    %921 = vmatprep.mubr.bf16.mxu0 0
    %922 = vmatmul.mubr.bf16.gmra.mxu0 %v887
    %v923 = vpop.f32.mrf.mxu0
    %v924 = vadd.f32 %v872, %v923
    %v925 = vpop.f32.mrf.mxu0
    %v926 = vpop.f32.mrf.mxu0
    %v927 = vadd.f32 %v872, %v926
    %v928 = vpop.f32.mrf.mxu0
    %929 = vdwg.mxu0
    %v930 = vmax.f32 %v924, 0.0
    %v931 = vmax.f32 %v927, 0.0
    %v932 = vpack.c.bf16 %v931, %v930
    %v933 = vld [vmem:[%s13] sm:$0xf]
    %v934 = vld [vmem:[%s13 + $0x4] sm:$0xf]
    %v935 = vld [vmem:[%s13 + $0x8] sm:$0xf]
    %v936 = vld [vmem:[%s13 + $0xc] sm:$0xf]
    %v937 = vld [vmem:[%s13 + $0x10] sm:$0xf]
    %v938 = vld [vmem:[%s13 + $0x14] sm:$0xf]
    %v939 = vld [vmem:[%s13 + $0x18] sm:$0xf]
    %v940 = vld [vmem:[%s13 + $0x1c] sm:$0xf]
    %v941 = vld [vmem:[%s14] sm:$0x1]
    %v943 = vlaneseq
    %v944 = vshrl.u32 %v943, 7
    %v945 = vsub.s32 0, %v944
    %v946 = vrot.slane %v941, %v945
    %v956 = vunpack.c.l.b16 %v933
    %v957 = vunpack.c.l.b16 %v934
    %v958 = vunpack.c.l.b16 %v935
    %v959 = vunpack.c.l.b16 %v936
    %v960 = vunpack.c.l.b16 %v937
    %v961 = vunpack.c.l.b16 %v938
    %v962 = vunpack.c.l.b16 %v939
    %v963 = vunpack.c.l.b16 %v940
    %v964 = vpack.c.b16 %v957, %v956
    %v965 = vpack.c.b16 %v959, %v958
    %v966 = vpack.c.b16 %v961, %v960
    %v967 = vpack.c.b16 %v963, %v962
    %vm972 = vcmask 523264
    %v974 = vsel %vm972, %v932, 0
    %976 = vmatprep.subr.bf16.mxu0 0
    %977 = vmatpush1.bf16.msra.mxu0 0
    %978 = vmatprep.subr.bf16.mxu0 0
    %979 = vmatpush1.bf16.msra.mxu0 0
    %980 = vmatprep.subr.bf16.mxu0 0
    %981 = vmatpush1.bf16.msra.mxu0 0
    %982 = vmatprep.subr.bf16.mxu0 0
    %983 = vmatpush1.bf16.msra.mxu0 0
    %984 = vmatprep.subr.bf16.mxu0 0
    %985 = vmatpush1.bf16.msra.mxu0 %v967
    %986 = vmatprep.subr.bf16.mxu0 0
    %987 = vmatpush1.bf16.msra.mxu0 %v966
    %988 = vmatprep.subr.bf16.mxu0 0
    %989 = vmatpush1.bf16.msra.mxu0 %v965
    %990 = vmatprep.subr.bf16.mxu0 0
    %991 = vmatpush1.bf16.msra.mxu0 %v964
    %992 = vmatprep.subr.bf16.mxu0 0
    %993 = vmatpush2.bf16.msra.mxu0 0
    %994 = vmatprep.subr.bf16.mxu0 0
    %995 = vmatpush2.bf16.msra.mxu0 0
    %996 = vmatprep.subr.bf16.mxu0 0
    %997 = vmatpush2.bf16.msra.mxu0 0
    %998 = vmatprep.subr.bf16.mxu0 0
    %999 = vmatpush2.bf16.msra.mxu0 0
    %1000 = vmatprep.subr.bf16.mxu0 0
    %1001 = vmatpush2.bf16.msra.mxu0 0
    %1002 = vmatprep.subr.bf16.mxu0 0
    %1003 = vmatpush2.bf16.msra.mxu0 0
    %1004 = vmatprep.subr.bf16.mxu0 0
    %1005 = vmatpush2.bf16.msra.mxu0 0
    %1006 = vmatprep.subr.bf16.mxu0 0
    %1007 = vmatpush2.bf16.msra.mxu0 0
    %1008 = vmatprep.mubr.bf16.mxu0 0
    %1009 = vmatmul.mubr.bf16.gmra.mxu0 %v974
    %v1010 = vpop.f32.mrf.mxu0
    %v1011 = vadd.f32 %v946, %v1010
    %v1012 = vpop.f32.mrf.mxu0
    %v1013 = vpop.f32.mrf.mxu0
    %v1014 = vadd.f32 %v946, %v1013
    %v1015 = vpop.f32.mrf.mxu0
    %1016 = vdwg.mxu0
    %v1017 = vsel %vm166, %v1011, 0.0
    %v1018 = vrot.slane %v1017, 4
    %v1019 = vadd.f32 %v1017, %v1018
    %v1020 = vrot.slane %v1019, 2
    %v1021 = vadd.f32 %v1019, %v1020
    %v1022 = vrot.slane %v1021, 1
    %v1023 = vadd.f32 %v1021, %v1022
    %v1024 = vsel %vm166, %v1014, 0.0
    %v1025 = vrot.slane %v1024, 4
    %v1026 = vadd.f32 %v1024, %v1025
    %v1027 = vrot.slane %v1026, 2
    %v1028 = vadd.f32 %v1026, %v1027
    %v1029 = vrot.slane %v1028, 1
    %v1030 = vadd.f32 %v1028, %v1029
    %v1031 = vrcp.pop 8.0
    %v1032 = vmul.f32 %v1023, %v1031
    %v1033 = vmul.f32 %v1030, %v1031
    %v1034 = vld [vmem:[%s15] sm:$0xff]
    %v1035 = vld [vmem:[%s15 + $0x8] sm:$0xff]
    %v1036 = vld [vmem:[%s15 + $0x10] sm:$0xff]
    %v1037 = vld [vmem:[%s15 + $0x18] sm:$0xff]
    %v1038 = vld [vmem:[%s16] sm:$0x1]
    %v1040 = vlaneseq
    %v1041 = vshrl.u32 %v1040, 7
    %v1042 = vsub.s32 0, %v1041
    %v1043 = vrot.slane %v1038, %v1042
    %vm1047 = vcmask 1041409
    %v1048 = vsel %vm1047, %v1033, %v1032
    %v1049 = vsel %vm166, %v1048, 0
    %1051 = vmatprep.subr.mxu0 0.0
    %1052 = vmatpush1.msra.mxu0 0.0
    %1053 = vmatprep.subr.mxu0 0.0
    %1054 = vmatpush1.msra.mxu0 0.0
    %1055 = vmatprep.subr.mxu0 0.0
    %1056 = vmatpush1.msra.mxu0 0.0
    %1057 = vmatprep.subr.mxu0 0.0
    %1058 = vmatpush1.msra.mxu0 0.0
    %1059 = vmatprep.subr.mxu0 0.0
    %1060 = vmatpush1.msra.mxu0 0.0
    %1061 = vmatprep.subr.mxu0 0.0
    %1062 = vmatpush1.msra.mxu0 0.0
    %1063 = vmatprep.subr.mxu0 0.0
    %1064 = vmatpush1.msra.mxu0 0.0
    %1065 = vmatprep.subr.mxu0 0.0
    %1066 = vmatpush1.msra.mxu0 0.0
    %1067 = vmatprep.subr.mxu0 0.0
    %1068 = vmatpush1.msra.mxu0 0.0
    %1069 = vmatprep.subr.mxu0 0.0
    %1070 = vmatpush1.msra.mxu0 0.0
    %1071 = vmatprep.subr.mxu0 0.0
    %1072 = vmatpush1.msra.mxu0 0.0
    %1073 = vmatprep.subr.mxu0 0.0
    %1074 = vmatpush1.msra.mxu0 0.0
    %1075 = vmatprep.subr.mxu0 0.0
    %1076 = vmatpush1.msra.mxu0 %v1037
    %1077 = vmatprep.subr.mxu0 0.0
    %1078 = vmatpush1.msra.mxu0 %v1036
    %1079 = vmatprep.subr.mxu0 0.0
    %1080 = vmatpush1.msra.mxu0 %v1035
    %1081 = vmatprep.subr.mxu0 0.0
    %1082 = vmatpush1.msra.mxu0 %v1034
    %1083 = vmatprep.subr.mxu0 0.0
    %1084 = vmatpush2.msra.mxu0 0.0
    %1085 = vmatprep.subr.mxu0 0.0
    %1086 = vmatpush2.msra.mxu0 0.0
    %1087 = vmatprep.subr.mxu0 0.0
    %1088 = vmatpush2.msra.mxu0 0.0
    %1089 = vmatprep.subr.mxu0 0.0
    %1090 = vmatpush2.msra.mxu0 0.0
    %1091 = vmatprep.subr.mxu0 0.0
    %1092 = vmatpush2.msra.mxu0 0.0
    %1093 = vmatprep.subr.mxu0 0.0
    %1094 = vmatpush2.msra.mxu0 0.0
    %1095 = vmatprep.subr.mxu0 0.0
    %1096 = vmatpush2.msra.mxu0 0.0
    %1097 = vmatprep.subr.mxu0 0.0
    %1098 = vmatpush2.msra.mxu0 0.0
    %1099 = vmatprep.subr.mxu0 0.0
    %1100 = vmatpush2.msra.mxu0 0.0
    %1101 = vmatprep.subr.mxu0 0.0
    %1102 = vmatpush2.msra.mxu0 0.0
    %1103 = vmatprep.subr.mxu0 0.0
    %1104 = vmatpush2.msra.mxu0 0.0
    %1105 = vmatprep.subr.mxu0 0.0
    %1106 = vmatpush2.msra.mxu0 0.0
    %1107 = vmatprep.subr.mxu0 0.0
    %1108 = vmatpush2.msra.mxu0 0.0
    %1109 = vmatprep.subr.mxu0 0.0
    %1110 = vmatpush2.msra.mxu0 0.0
    %1111 = vmatprep.subr.mxu0 0.0
    %1112 = vmatpush2.msra.mxu0 0.0
    %1113 = vmatprep.subr.mxu0 0.0
    %1114 = vmatpush2.msra.mxu0 0.0
    %1115 = vmatprep.mubr.f32.mxu0 0.0
    %1116 = vmatmul.mubr.f32.gmra.mxu0 %v1049
    %v1117 = vpop.f32.mrf.mxu0
    %v1118 = vadd.f32 %v1043, %v1117
    %v1119 = vpop.f32.mrf.mxu0
    %1120 = vdwg.mxu0
    %v1121 = vmax.f32 %v1118, 0.0
    %v1122 = vld [vmem:[%s17] sm:$0x3]
    %v1123 = vld [vmem:[%s18] sm:$0x1]
    %v1125 = vlaneseq
    %v1126 = vshrl.u32 %v1125, 7
    %v1127 = vsub.s32 0, %v1126
    %v1128 = vrot.slane %v1123, %v1127
    %vm1130 = vcmask 15360
    %v1132 = vsel %vm1130, %v1121, 0
    %vm1134 = vcmask 1041408
    %v1136 = vsel %vm1134, %v1122, 0
    %1138 = vmatprep.subr.mxu0 0.0
    %1139 = vmatpush1.msra.mxu0 0.0
    %1140 = vmatprep.subr.mxu0 0.0
    %1141 = vmatpush1.msra.mxu0 0.0
    %1142 = vmatprep.subr.mxu0 0.0
    %1143 = vmatpush1.msra.mxu0 0.0
    %1144 = vmatprep.subr.mxu0 0.0
    %1145 = vmatpush1.msra.mxu0 0.0
    %1146 = vmatprep.subr.mxu0 0.0
    %1147 = vmatpush1.msra.mxu0 0.0
    %1148 = vmatprep.subr.mxu0 0.0
    %1149 = vmatpush1.msra.mxu0 0.0
    %1150 = vmatprep.subr.mxu0 0.0
    %1151 = vmatpush1.msra.mxu0 0.0
    %1152 = vmatprep.subr.mxu0 0.0
    %1153 = vmatpush1.msra.mxu0 0.0
    %1154 = vmatprep.subr.mxu0 0.0
    %1155 = vmatpush1.msra.mxu0 0.0
    %1156 = vmatprep.subr.mxu0 0.0
    %1157 = vmatpush1.msra.mxu0 0.0
    %1158 = vmatprep.subr.mxu0 0.0
    %1159 = vmatpush1.msra.mxu0 0.0
    %1160 = vmatprep.subr.mxu0 0.0
    %1161 = vmatpush1.msra.mxu0 0.0
    %1162 = vmatprep.subr.mxu0 0.0
    %1163 = vmatpush1.msra.mxu0 0.0
    %1164 = vmatprep.subr.mxu0 0.0
    %1165 = vmatpush1.msra.mxu0 0.0
    %1166 = vmatprep.subr.mxu0 0.0
    %1167 = vmatpush1.msra.mxu0 0.0
    %1168 = vmatprep.subr.mxu0 0.0
    %1169 = vmatpush1.msra.mxu0 %v1136
    %1170 = vmatprep.subr.mxu0 0.0
    %1171 = vmatpush2.msra.mxu0 0.0
    %1172 = vmatprep.subr.mxu0 0.0
    %1173 = vmatpush2.msra.mxu0 0.0
    %1174 = vmatprep.subr.mxu0 0.0
    %1175 = vmatpush2.msra.mxu0 0.0
    %1176 = vmatprep.subr.mxu0 0.0
    %1177 = vmatpush2.msra.mxu0 0.0
    %1178 = vmatprep.subr.mxu0 0.0
    %1179 = vmatpush2.msra.mxu0 0.0
    %1180 = vmatprep.subr.mxu0 0.0
    %1181 = vmatpush2.msra.mxu0 0.0
    %1182 = vmatprep.subr.mxu0 0.0
    %1183 = vmatpush2.msra.mxu0 0.0
    %1184 = vmatprep.subr.mxu0 0.0
    %1185 = vmatpush2.msra.mxu0 0.0
    %1186 = vmatprep.subr.mxu0 0.0
    %1187 = vmatpush2.msra.mxu0 0.0
    %1188 = vmatprep.subr.mxu0 0.0
    %1189 = vmatpush2.msra.mxu0 0.0
    %1190 = vmatprep.subr.mxu0 0.0
    %1191 = vmatpush2.msra.mxu0 0.0
    %1192 = vmatprep.subr.mxu0 0.0
    %1193 = vmatpush2.msra.mxu0 0.0
    %1194 = vmatprep.subr.mxu0 0.0
    %1195 = vmatpush2.msra.mxu0 0.0
    %1196 = vmatprep.subr.mxu0 0.0
    %1197 = vmatpush2.msra.mxu0 0.0
    %1198 = vmatprep.subr.mxu0 0.0
    %1199 = vmatpush2.msra.mxu0 0.0
    %1200 = vmatprep.subr.mxu0 0.0
    %1201 = vmatpush2.msra.mxu0 0.0
    %1202 = vmatprep.mubr.f32.mxu0 0.0
    %1203 = vmatmul.mubr.f32.gmra.mxu0 %v1132
    %v1204 = vpop.f32.mrf.mxu0
    %v1205 = vadd.f32 %v1128, %v1204
    %v1206 = vpop.f32.mrf.mxu0
    %1207 = vdwg.mxu0
    %v1208 = vxor.u32 %v1205, 2147483648
    %v1209 = vmul.f32 %v1208, 1.442695
    %v1210 = vpow.pop %v1209
    %v1211 = vadd.f32 %v1210, 1.0
    %v1212 = vrcp.pop %v1211
    %v1213 = vmul.f32 1.0, %v1212
    %v1216 = vunpack.c.l.s4 1966171168
    %v1217 = vunpack.c.0.s8 %v1216
    %v1218 = vlaneseq
    %v1219 = vshrl.u32 %v1218, 7
    %v1220 = vsub.s32 %v1217, %v1219
    %v1221 = vrot.slane %v1213, %v1220
    %v1222 = vcombine.high %v1221, %v1221
    %v1224 = vunpack.c.l.s4 1966171168
    %v1225 = vunpack.c.0.s8 %v1224
    %v1226 = vlaneseq
    %v1227 = vshrl.u32 %v1226, 7
    %v1228 = vsub.s32 %v1225, %v1227
    %v1229 = vrot.slane %v1221, %v1228
    %v1231 = vunpack.c.l.s4 1966171168
    %v1232 = vunpack.c.0.s8 %v1231
    %v1233 = vlaneseq
    %v1234 = vshrl.u32 %v1233, 7
    %v1235 = vsub.s32 %v1232, %v1234
    %v1236 = vrot.slane %v1222, %v1235
    %v1237 = vlaneseq
    %v1238 = vshrl.u32 %v1237, 7
    %v1239 = vsub.s32 0, %v1238
    %v1240 = vrot.slane %v1229, %v1239
    %v1241 = vlaneseq
    %v1242 = vshrl.u32 %v1241, 7
    %v1243 = vsub.s32 0, %v1242
    %v1244 = vrot.slane %v1236, %v1243
    %v1247 = vmul.f32 %v1011, %v1240
    %v1248 = vmul.f32 %v1014, %v1244
    %v1249 = vadd.f32 %v860, %v1247
    %v1250 = vadd.f32 %v861, %v1248
    %v1251 = vld [vmem:[%s19] sm:$0x1]
    %v1252 = vld [vmem:[%s20] sm:$0x1]
    %v1253 = vsel %vm166, %v1249, 0.0
    %1254 = vadd.xlane.f32.xlu0 %v1253
    %v1255 = vpop.xlane.xlu0 %1254
    %v1256 = vsel %vm166, %v1250, 0.0
    %1257 = vadd.xlane.f32.xlu0 %v1256
    %v1258 = vpop.xlane.xlu0 %1257
    %v1259 = vmul.f32 %v1255, %v825
    %v1260 = vmul.f32 %v1258, %v825
    %v1261 = vsub.f32 %v1249, %v1259
    %v1262 = vsub.f32 %v1250, %v1260
    %v1263 = vmul.f32 %v1261, %v1261
    %v1264 = vmul.f32 %v1262, %v1262
    %v1265 = vsel %vm166, %v1263, 0.0
    %1266 = vadd.xlane.f32.xlu0 %v1265
    %v1267 = vpop.xlane.xlu0 %1266
    %v1268 = vsel %vm166, %v1264, 0.0
    %1269 = vadd.xlane.f32.xlu0 %v1268
    %v1270 = vpop.xlane.xlu0 %1269
    %v1271 = vmul.f32 %v1267, %v825
    %v1272 = vmul.f32 %v1270, %v825
    %v1273 = vadd.f32 %v1271, 1e-05
    %v1274 = vadd.f32 %v1272, 1e-05
    %v1275 = vrsqrt.pop %v1273
    %v1276 = vrsqrt.pop %v1274
    %v1277 = vmul.f32 %v1261, %v1275
    %v1278 = vmul.f32 %v1262, %v1276
    %v1280 = vlaneseq
    %v1281 = vshrl.u32 %v1280, 7
    %v1282 = vsub.s32 0, %v1281
    %v1283 = vrot.slane %v1251, %v1282
    %v1285 = vmul.f32 %v1277, %v1283
    %v1286 = vmul.f32 %v1278, %v1283
    %v1288 = vlaneseq
    %v1289 = vshrl.u32 %v1288, 7
    %v1290 = vsub.s32 0, %v1289
    %v1291 = vrot.slane %v1252, %v1290
    %v1293 = vadd.f32 %v1285, %v1291
    %v1294 = vadd.f32 %v1286, %v1291
    %1295 = vst.msk [vmem:[#allocation13] sm:$0xff] %vm166, %v1293
    %1296 = vst.msk [vmem:[#allocation13 + $0x8] sm:$0xff] %vm166, %v1294
    // Predicated region
    $region110: #{tpu_custom_call.1} parent=1 // pred_check
      _
    $region111: #{tpu_custom_call.1} parent=1 // pred_check_branch
      %1298 = sbr.rel (0) target = $region113
    $region112: #{tpu_custom_call.1} parent=1 // pred_region
      %s1300 = ssub.s32 256, 256
      %1301 = vsyncadd [#allocation4], %s1300
      %s1302 = sshll.u32 [#allocation13], 4
      %s1303 = int_to_ptr.vmem [resolvable:$true] %s1302
      %1308 = dma.vmem_to_hbm [thread:$0]  %s1303, 256, %s21, [#allocation4], 128, 128, 8
    $region113: #{tpu_custom_call.1} parent=1 // pred_fallthru
      _
    // Predicated region
    $region114: #{tpu_custom_call.1} parent=1 // pred_check
      _
    $region115: #{tpu_custom_call.1} parent=1 // pred_check_branch
      %1310 = sbr.rel (0) target = $region117
    $region116: #{tpu_custom_call.1} parent=1 // pred_region
      %1311 = dma.done [#allocation4], 256
    $region117: #{tpu_custom_call.1} parent=1 // pred_fallthru
      _
    %1312 = vsyncpa [#allocation3], 1
    %1313 = vsyncpa [#allocation6], 1
    %1314 = vsyncpa [#allocation9], 1
    %1315 = vsyncpa [#allocation12], 1
    %1316 = vsyncpa [#allocation4], 1

</llo_original>
